<compile_context>
chip_gen: v6e
topology: v6e:2x2x1
jax: 0.10.0
libtpu: 0.0.40
codegen_flags: <defaults>
</compile_context>

<pallas_src>
import functools

import jax
import jax.numpy as jnp
import numpy as np
from jax.experimental import pallas as pl
from jax.experimental.pallas import tpu as pltpu


# ---------------------------------------------------------------------------
# Fused kernel: one grid step == one batch sample, channel-major (C, H*W)
# lane-dense layout (pixels on lanes, channels on sublanes).
# ---------------------------------------------------------------------------
def _shake_shake_kernel(x_ref, w1_ref, b1_ref, w2_ref, b2_ref, m_ref, o_ref,
                        *, img_w):
    # x_ref : (1, Cin, HW) f32      one sample (doubles as the residual)
    # w1_ref: (3, 3, 2C, Cin) bf16  layer-1 taps, branches concat on Cout, BN folded
    # b1_ref: (2C, 1) f32           [bias_a1 ; bias_b1]
    # w2_ref: (3, 3, C, 2C) bf16    layer-2 taps, branches stacked on Cin,
    #                               BN + 0.5 eval shake gate folded
    # b2_ref: (C, 1) f32            0.5*(bias_a2 + bias_b2)
    # m_ref : (4, HW) f32           0/1 masks [row>=1, row<=H-2, col>=1, col<=W-2]
    # o_ref : (1, C, HW) f32
    HW = x_ref.shape[2]
    W = img_w

    row_mask = (m_ref[0:1, :], None, m_ref[1:2, :])     # for dy = 0, 1, 2
    col_mask = (m_ref[2:3, :], None, m_ref[3:4, :])     # for dx = 0, 1, 2

    def conv3x3(act, w_ref):
        """act (Cin', HW) f32 (already ReLU'd) -> (Cout, HW) f32.

        Each 3x3 tap is an XLU lane roll + 0/1 mask multiply (no halo scratch,
        no materialized im2col); the 9 taps are accumulated as bf16 MXU
        matmuls with f32 accumulation.  Matmul N-dim = HW (lane dense)."""
        acc = None
        for dy in range(3):
            if dy == 1:
                xr = act
            else:
                xr = pltpu.roll(act, shift=(-(dy - 1) * W) % HW, axis=1)
                xr = xr * row_mask[dy]
            for dx in range(3):
                if dx == 1:
                    xt = xr
                else:
                    xt = pltpu.roll(xr, shift=(-(dx - 1)) % HW, axis=1)
                    xt = xt * col_mask[dx]
                t = jnp.dot(w_ref[dy, dx], xt.astype(jnp.bfloat16),
                            preferred_element_type=jnp.float32)
                acc = t if acc is None else acc + t
        return acc

    x = x_ref[0]                                   # (Cin, HW) f32
    a0 = jnp.maximum(x, 0.0)                       # ReLU(x)
    y1 = conv3x3(a0, w1_ref) + b1_ref[...]         # (2C, HW) = [a1 | b1]
    a1 = jnp.maximum(y1, 0.0)
    y2 = conv3x3(a1, w2_ref) + b2_ref[...]         # (C, HW) = 0.5*(a2 + b2)
    o_ref[0] = (x + y2).astype(o_ref.dtype)        # fused shake + residual


# ---------------------------------------------------------------------------
# Wrapper
# ---------------------------------------------------------------------------
@jax.jit
def shake_shake_block_forward(x_nchw, fused):
    """x_nchw: (N, Cin, H, W) f32; fused: dict from prepare_fused_params()."""
    N, Cin, H, W = x_nchw.shape
    C = fused["b2"].shape[0]
    assert Cin == C, "stride=1 / downsample=None path requires inplanes == planes"
    HW = H * W

    # NCHW is already channel-major: flattening (H, W) is a free reshape (no
    # HBM transpose) and H*W becomes the lane axis inside the kernel.
    x3 = x_nchw.reshape(N, Cin, HW).astype(jnp.float32)

    # 0/1 boundary masks for the rolled 3x3 taps (computed once, VMEM resident).
    pix = jnp.arange(HW, dtype=jnp.int32)
    row, col = pix // W, pix % W
    masks = jnp.stack([row >= 1, row <= H - 2, col >= 1, col <= W - 2],
                      axis=0).astype(jnp.float32)                   # (4, HW)

    out = pl.pallas_call(
        functools.partial(_shake_shake_kernel, img_w=W),
        out_shape=jax.ShapeDtypeStruct((N, C, HW), jnp.float32),
        grid_spec=pltpu.PrefetchScalarGridSpec(
            num_scalar_prefetch=0,
            grid=(N,),                            # pipeline / megacore over batch
            in_specs=[
                pl.BlockSpec((1, Cin, HW), lambda n: (n, 0, 0)),
                pl.BlockSpec((3, 3, 2 * C, Cin), lambda n: (0, 0, 0, 0)),
                pl.BlockSpec((2 * C, 1), lambda n: (0, 0)),
                pl.BlockSpec((3, 3, C, 2 * C), lambda n: (0, 0, 0, 0)),
                pl.BlockSpec((C, 1), lambda n: (0, 0)),
                pl.BlockSpec((4, HW), lambda n: (0, 0)),
            ],
            out_specs=pl.BlockSpec((1, C, HW), lambda n: (n, 0, 0)),
        ),
        compiler_params=pltpu.CompilerParams(
            dimension_semantics=("parallel",),
            # Re-derived budget: double-buffered (C, HW) in/out blocks, the
            # resident weights/masks and per-tap temporaries stay far below
            # this even at C=256, H=W=32 -- comfortably inside v7x's 64 MiB/TC.
            vmem_limit_bytes=40 * 1024 * 1024,
        ),
    )(x3, fused["w1"], fused["b1"], fused["w2"], fused["b2"], masks)

    return out.reshape(N, C, H, W)


# ---------------------------------------------------------------------------
# Parameter preparation: fold eval BN into conv weights, fuse branches,
# bake the eval shake gate, lay taps out as (ky, kx, Cout, Cin) bf16 blocks.
# ---------------------------------------------------------------------------
def fold_bn(gamma, beta, mean, var, eps=1e-5):
    scale = gamma / jnp.sqrt(var + eps)
    return scale, beta - mean * scale


def prepare_fused_params(raw):
    s_a1, c_a1 = fold_bn(*raw["bn_a1"])
    s_b1, c_b1 = fold_bn(*raw["bn_b1"])
    s_a2, c_a2 = fold_bn(*raw["bn_a2"])
    s_b2, c_b2 = fold_bn(*raw["bn_b2"])
    w_a1 = raw["w_a1"] * s_a1[:, None, None, None]     # OIHW (C, Cin, 3, 3)
    w_b1 = raw["w_b1"] * s_b1[:, None, None, None]
    w_a2 = raw["w_a2"] * s_a2[:, None, None, None]
    w_b2 = raw["w_b2"] * s_b2[:, None, None, None]
    C, Cin = w_a1.shape[0], w_a1.shape[1]

    # Layer 1: branches concatenated on Cout -> output channels [a1 | b1].
    w1 = jnp.transpose(jnp.concatenate([w_a1, w_b1], axis=0),
                       (2, 3, 0, 1))                    # (3, 3, 2C, Cin)
    b1 = jnp.concatenate([c_a1, c_b1]).reshape(2 * C, 1)

    # Layer 2: branches stacked on Cin with the eval shake gate 0.5 folded, so
    # one conv over [a1 | b1] yields 0.5*(a2 + b2) directly.  (0.5 is a power
    # of two, so folding it before the bf16 cast is exact.)
    w2 = jnp.transpose(0.5 * jnp.concatenate([w_a2, w_b2], axis=1),
                       (2, 3, 0, 1))                    # (3, 3, C, 2C)
    b2 = (0.5 * (c_a2 + c_b2)).reshape(C, 1)

    # NOTE: BN scale is folded into the bf16 weights; keep it as an f32
    # epilogue multiply instead if bit-closer parity with f32 BN is required.
    return dict(w1=w1.astype(jnp.bfloat16), b1=b1.astype(jnp.float32),
                w2=w2.astype(jnp.bfloat16), b2=b2.astype(jnp.float32))


# ---------------------------------------------------------------------------
# Pure-JAX references (for correctness checks), NCHW / OIHW like PyTorch.
# ---------------------------------------------------------------------------
def _conv3x3_nchw(x, w):
    return jax.lax.conv_general_dilated(
        x, w, window_strides=(1, 1), padding=((1, 1), (1, 1)),
        dimension_numbers=("NCHW", "OIHW", "NCHW"),
        preferred_element_type=jnp.float32)


def reference_forward_bf16(x_nchw, raw):
    """Per-branch XLA-conv reference with the same folded bf16 weights the
    kernel uses (tight check of the Pallas implementation)."""
    x = x_nchw.astype(jnp.float32)

    def branch(w1, bn1, w2, bn2):
        s1, c1 = fold_bn(*bn1)
        s2, c2 = fold_bn(*bn2)
        h = _conv3x3_nchw(jnp.maximum(x, 0.0).astype(jnp.bfloat16),
                          (w1 * s1[:, None, None, None]).astype(jnp.bfloat16))
        h = h + c1[None, :, None, None]
        h2 = _conv3x3_nchw(jnp.maximum(h, 0.0).astype(jnp.bfloat16),
                           (w2 * s2[:, None, None, None]).astype(jnp.bfloat16))
        return h2 + c2[None, :, None, None]

    a = branch(raw["w_a1"], raw["bn_a1"], raw["w_a2"], raw["bn_a2"])
    b = branch(raw["w_b1"], raw["bn_b1"], raw["w_b2"], raw["bn_b2"])
    return x + 0.5 * (a + b)


def reference_forward_f32(x_nchw, raw):
    """Literal eval-mode module math in f32 (loose check of folding/fusion)."""
    x = x_nchw.astype(jnp.float32)

    def bn(h, g, b, m, v, eps=1e-5):
        inv = g / jnp.sqrt(v + eps)
        return (h - m[None, :, None, None]) * inv[None, :, None, None] \
            + b[None, :, None, None]

    def branch(w1, bn1, w2, bn2):
        h = bn(_conv3x3_nchw(jnp.maximum(x, 0.0), w1), *bn1)
        return bn(_conv3x3_nchw(jnp.maximum(h, 0.0), w2), *bn2)

    a = branch(raw["w_a1"], raw["bn_a1"], raw["w_a2"], raw["bn_a2"])
    b = branch(raw["w_b1"], raw["bn_b1"], raw["w_b2"], raw["bn_b2"])
    return x + 0.5 * (a + b)


# ---------------------------------------------------------------------------
if __name__ == "__main__":
    key = jax.random.PRNGKey(0)
    N, C, H, W = 2, 4, 16, 16           # inplanes = planes = 4, stride = 1
    inplanes = planes = C

    keys = jax.random.split(key, 9)
    x = jax.random.normal(keys[0], (N, C, H, W), dtype=jnp.float32)

    def conv_w(k, cin, cout):
        fan_in = 9 * cin                # OIHW, Kaiming-ish
        return jax.random.normal(k, (cout, cin, 3, 3), jnp.float32) * (2.0 / fan_in) ** 0.5

    def bn_raw(k, c):
        k1, k2, k3, k4 = jax.random.split(k, 4)
        gamma = 1.0 + 0.1 * jax.random.normal(k1, (c,), jnp.float32)
        beta = 0.1 * jax.random.normal(k2, (c,), jnp.float32)
        mean = 0.1 * jax.random.normal(k3, (c,), jnp.float32)
        var = 1.0 + 0.1 * jax.random.uniform(k4, (c,), jnp.float32)
        return (gamma, beta, mean, var)

    raw = dict(
        w_a1=conv_w(keys[1], inplanes, planes), bn_a1=bn_raw(keys[5], planes),
        w_a2=conv_w(keys[2], planes, planes),   bn_a2=bn_raw(keys[6], planes),
        w_b1=conv_w(keys[3], inplanes, planes), bn_b1=bn_raw(keys[7], planes),
        w_b2=conv_w(keys[4], planes, planes),   bn_b2=bn_raw(keys[8], planes),
    )
    fused = prepare_fused_params(raw)

    out = jax.block_until_ready(shake_shake_block_forward(x, fused))
    assert out.shape == (N, C, H, W)

    ref16 = jax.block_until_ready(reference_forward_bf16(x, raw))
    ref32 = jax.block_until_ready(reference_forward_f32(x, raw))
    np.testing.assert_allclose(np.asarray(out), np.asarray(ref16), rtol=1e-2, atol=1e-2)
    np.testing.assert_allclose(np.asarray(out), np.asarray(ref32), rtol=1e-1, atol=1e-1)

    print("KERNEL_OK")
</pallas_src>

<mosaic_0001>
module attributes {stable_mosaic.version = 11 : i64} {
  func.func @_shake_shake_kernel(%arg0: i32, %arg1: memref<1x4x256xf32, #tpu.memory_space<vmem>>, %arg2: memref<3x3x8x4xbf16, #tpu.memory_space<vmem>>, %arg3: memref<8x1xf32, #tpu.memory_space<vmem>>, %arg4: memref<3x3x4x8xbf16, #tpu.memory_space<vmem>>, %arg5: memref<4x1xf32, #tpu.memory_space<vmem>>, %arg6: memref<4x256xf32, #tpu.memory_space<vmem>>, %arg7: memref<1x4x256xf32, #tpu.memory_space<vmem>>) attributes {dimension_semantics = [#tpu.dimension_semantics<parallel>], iteration_bounds = array<i64: 2>, scalar_prefetch = 0 : i64, scratch_operands = 0 : i64, tpu.core_type = #tpu.core_type<tc>, window_params = [{transform_indices = @transform_0, window_bounds = array<i64: 1, 4, 256>}, {pipeline_mode = #tpu.pipeline_mode<synchronous>, transform_indices = @transform_1, window_bounds = array<i64: 3, 3, 8, 4>}, {pipeline_mode = #tpu.pipeline_mode<synchronous>, transform_indices = @transform_2, window_bounds = array<i64: 8, 1>}, {pipeline_mode = #tpu.pipeline_mode<synchronous>, transform_indices = @transform_3, window_bounds = array<i64: 3, 3, 4, 8>}, {pipeline_mode = #tpu.pipeline_mode<synchronous>, transform_indices = @transform_4, window_bounds = array<i64: 4, 1>}, {pipeline_mode = #tpu.pipeline_mode<synchronous>, transform_indices = @transform_5, window_bounds = array<i64: 4, 256>}, {transform_indices = @transform_6, window_bounds = array<i64: 1, 4, 256>}]} {
    %c0 = arith.constant 0 : index
    %c0_0 = arith.constant 0 : index
    %0 = vector.load %arg6[%c0, %c0_0] : memref<4x256xf32, #tpu.memory_space<vmem>>, vector<1x256xf32>
    %c1 = arith.constant 1 : index
    %c0_1 = arith.constant 0 : index
    %1 = vector.load %arg6[%c1, %c0_1] : memref<4x256xf32, #tpu.memory_space<vmem>>, vector<1x256xf32>
    %c2 = arith.constant 2 : index
    %c0_2 = arith.constant 0 : index
    %2 = vector.load %arg6[%c2, %c0_2] : memref<4x256xf32, #tpu.memory_space<vmem>>, vector<1x256xf32>
    %c3 = arith.constant 3 : index
    %c0_3 = arith.constant 0 : index
    %3 = vector.load %arg6[%c3, %c0_3] : memref<4x256xf32, #tpu.memory_space<vmem>>, vector<1x256xf32>
    %c0_4 = arith.constant 0 : index
    %c0_5 = arith.constant 0 : index
    %c0_6 = arith.constant 0 : index
    %4 = vector.load %arg1[%c0_4, %c0_5, %c0_6] : memref<1x4x256xf32, #tpu.memory_space<vmem>>, vector<1x4x256xf32>
    %5 = vector.shape_cast %4 : vector<1x4x256xf32> to vector<4x256xf32>
    %cst = arith.constant 0.000000e+00 : f32
    %6 = vector.broadcast %cst : f32 to vector<4x256xf32>
    %7 = arith.maximumf %5, %6 : vector<4x256xf32>
    %c16_i32 = arith.constant 16 : i32
    %8 = tpu.dynamic_rotate %7 by %c16_i32 dim 1 : vector<4x256xf32>, i32 -> vector<4x256xf32>
    %9 = vector.broadcast %0 : vector<1x256xf32> to vector<4x256xf32>
    %10 = arith.mulf %8, %9 : vector<4x256xf32>
    %c1_i32 = arith.constant 1 : i32
    %11 = tpu.dynamic_rotate %10 by %c1_i32 dim 1 : vector<4x256xf32>, i32 -> vector<4x256xf32>
    %12 = vector.broadcast %2 : vector<1x256xf32> to vector<4x256xf32>
    %13 = arith.mulf %11, %12 : vector<4x256xf32>
    %c0_7 = arith.constant 0 : index
    %c0_8 = arith.constant 0 : index
    %c0_9 = arith.constant 0 : index
    %c0_10 = arith.constant 0 : index
    %14 = vector.load %arg2[%c0_7, %c0_8, %c0_9, %c0_10] : memref<3x3x8x4xbf16, #tpu.memory_space<vmem>>, vector<1x1x8x4xbf16>
    %15 = vector.shape_cast %14 : vector<1x1x8x4xbf16> to vector<8x4xbf16>
    %16 = arith.truncf %13 : vector<4x256xf32> to vector<4x256xbf16>
    %cst_11 = arith.constant dense<0.000000e+00> : vector<8x256xf32>
    %17 = tpu.matmul %15, %16, %cst_11 {dimension_numbers = #tpu.dot_dimension_numbers<[1], [0], [0], [1], [0, 0, 1, 1], [], []>} : vector<8x4xbf16>, vector<4x256xbf16>, vector<8x256xf32> -> vector<8x256xf32>
    %c0_12 = arith.constant 0 : index
    %c1_13 = arith.constant 1 : index
    %c0_14 = arith.constant 0 : index
    %c0_15 = arith.constant 0 : index
    %18 = vector.load %arg2[%c0_12, %c1_13, %c0_14, %c0_15] : memref<3x3x8x4xbf16, #tpu.memory_space<vmem>>, vector<1x1x8x4xbf16>
    %19 = vector.shape_cast %18 : vector<1x1x8x4xbf16> to vector<8x4xbf16>
    %20 = arith.truncf %10 : vector<4x256xf32> to vector<4x256xbf16>
    %cst_16 = arith.constant dense<0.000000e+00> : vector<8x256xf32>
    %21 = tpu.matmul %19, %20, %cst_16 {dimension_numbers = #tpu.dot_dimension_numbers<[1], [0], [0], [1], [0, 0, 1, 1], [], []>} : vector<8x4xbf16>, vector<4x256xbf16>, vector<8x256xf32> -> vector<8x256xf32>
    %22 = arith.addf %17, %21 : vector<8x256xf32>
    %c255_i32 = arith.constant 255 : i32
    %23 = tpu.dynamic_rotate %10 by %c255_i32 dim 1 : vector<4x256xf32>, i32 -> vector<4x256xf32>
    %24 = vector.broadcast %3 : vector<1x256xf32> to vector<4x256xf32>
    %25 = arith.mulf %23, %24 : vector<4x256xf32>
    %c0_17 = arith.constant 0 : index
    %c2_18 = arith.constant 2 : index
    %c0_19 = arith.constant 0 : index
    %c0_20 = arith.constant 0 : index
    %26 = vector.load %arg2[%c0_17, %c2_18, %c0_19, %c0_20] : memref<3x3x8x4xbf16, #tpu.memory_space<vmem>>, vector<1x1x8x4xbf16>
    %27 = vector.shape_cast %26 : vector<1x1x8x4xbf16> to vector<8x4xbf16>
    %28 = arith.truncf %25 : vector<4x256xf32> to vector<4x256xbf16>
    %cst_21 = arith.constant dense<0.000000e+00> : vector<8x256xf32>
    %29 = tpu.matmul %27, %28, %cst_21 {dimension_numbers = #tpu.dot_dimension_numbers<[1], [0], [0], [1], [0, 0, 1, 1], [], []>} : vector<8x4xbf16>, vector<4x256xbf16>, vector<8x256xf32> -> vector<8x256xf32>
    %30 = arith.addf %22, %29 : vector<8x256xf32>
    %c1_i32_22 = arith.constant 1 : i32
    %31 = tpu.dynamic_rotate %7 by %c1_i32_22 dim 1 : vector<4x256xf32>, i32 -> vector<4x256xf32>
    %32 = vector.broadcast %2 : vector<1x256xf32> to vector<4x256xf32>
    %33 = arith.mulf %31, %32 : vector<4x256xf32>
    %c1_23 = arith.constant 1 : index
    %c0_24 = arith.constant 0 : index
    %c0_25 = arith.constant 0 : index
    %c0_26 = arith.constant 0 : index
    %34 = vector.load %arg2[%c1_23, %c0_24, %c0_25, %c0_26] : memref<3x3x8x4xbf16, #tpu.memory_space<vmem>>, vector<1x1x8x4xbf16>
    %35 = vector.shape_cast %34 : vector<1x1x8x4xbf16> to vector<8x4xbf16>
    %36 = arith.truncf %33 : vector<4x256xf32> to vector<4x256xbf16>
    %cst_27 = arith.constant dense<0.000000e+00> : vector<8x256xf32>
    %37 = tpu.matmul %35, %36, %cst_27 {dimension_numbers = #tpu.dot_dimension_numbers<[1], [0], [0], [1], [0, 0, 1, 1], [], []>} : vector<8x4xbf16>, vector<4x256xbf16>, vector<8x256xf32> -> vector<8x256xf32>
    %38 = arith.addf %30, %37 : vector<8x256xf32>
    %c1_28 = arith.constant 1 : index
    %c1_29 = arith.constant 1 : index
    %c0_30 = arith.constant 0 : index
    %c0_31 = arith.constant 0 : index
    %39 = vector.load %arg2[%c1_28, %c1_29, %c0_30, %c0_31] : memref<3x3x8x4xbf16, #tpu.memory_space<vmem>>, vector<1x1x8x4xbf16>
    %40 = vector.shape_cast %39 : vector<1x1x8x4xbf16> to vector<8x4xbf16>
    %41 = arith.truncf %7 : vector<4x256xf32> to vector<4x256xbf16>
    %cst_32 = arith.constant dense<0.000000e+00> : vector<8x256xf32>
    %42 = tpu.matmul %40, %41, %cst_32 {dimension_numbers = #tpu.dot_dimension_numbers<[1], [0], [0], [1], [0, 0, 1, 1], [], []>} : vector<8x4xbf16>, vector<4x256xbf16>, vector<8x256xf32> -> vector<8x256xf32>
    %43 = arith.addf %38, %42 : vector<8x256xf32>
    %c255_i32_33 = arith.constant 255 : i32
    %44 = tpu.dynamic_rotate %7 by %c255_i32_33 dim 1 : vector<4x256xf32>, i32 -> vector<4x256xf32>
    %45 = vector.broadcast %3 : vector<1x256xf32> to vector<4x256xf32>
    %46 = arith.mulf %44, %45 : vector<4x256xf32>
    %c1_34 = arith.constant 1 : index
    %c2_35 = arith.constant 2 : index
    %c0_36 = arith.constant 0 : index
    %c0_37 = arith.constant 0 : index
    %47 = vector.load %arg2[%c1_34, %c2_35, %c0_36, %c0_37] : memref<3x3x8x4xbf16, #tpu.memory_space<vmem>>, vector<1x1x8x4xbf16>
    %48 = vector.shape_cast %47 : vector<1x1x8x4xbf16> to vector<8x4xbf16>
    %49 = arith.truncf %46 : vector<4x256xf32> to vector<4x256xbf16>
    %cst_38 = arith.constant dense<0.000000e+00> : vector<8x256xf32>
    %50 = tpu.matmul %48, %49, %cst_38 {dimension_numbers = #tpu.dot_dimension_numbers<[1], [0], [0], [1], [0, 0, 1, 1], [], []>} : vector<8x4xbf16>, vector<4x256xbf16>, vector<8x256xf32> -> vector<8x256xf32>
    %51 = arith.addf %43, %50 : vector<8x256xf32>
    %c240_i32 = arith.constant 240 : i32
    %52 = tpu.dynamic_rotate %7 by %c240_i32 dim 1 : vector<4x256xf32>, i32 -> vector<4x256xf32>
    %53 = vector.broadcast %1 : vector<1x256xf32> to vector<4x256xf32>
    %54 = arith.mulf %52, %53 : vector<4x256xf32>
    %c1_i32_39 = arith.constant 1 : i32
    %55 = tpu.dynamic_rotate %54 by %c1_i32_39 dim 1 : vector<4x256xf32>, i32 -> vector<4x256xf32>
    %56 = vector.broadcast %2 : vector<1x256xf32> to vector<4x256xf32>
    %57 = arith.mulf %55, %56 : vector<4x256xf32>
    %c2_40 = arith.constant 2 : index
    %c0_41 = arith.constant 0 : index
    %c0_42 = arith.constant 0 : index
    %c0_43 = arith.constant 0 : index
    %58 = vector.load %arg2[%c2_40, %c0_41, %c0_42, %c0_43] : memref<3x3x8x4xbf16, #tpu.memory_space<vmem>>, vector<1x1x8x4xbf16>
    %59 = vector.shape_cast %58 : vector<1x1x8x4xbf16> to vector<8x4xbf16>
    %60 = arith.truncf %57 : vector<4x256xf32> to vector<4x256xbf16>
    %cst_44 = arith.constant dense<0.000000e+00> : vector<8x256xf32>
    %61 = tpu.matmul %59, %60, %cst_44 {dimension_numbers = #tpu.dot_dimension_numbers<[1], [0], [0], [1], [0, 0, 1, 1], [], []>} : vector<8x4xbf16>, vector<4x256xbf16>, vector<8x256xf32> -> vector<8x256xf32>
    %62 = arith.addf %51, %61 : vector<8x256xf32>
    %c2_45 = arith.constant 2 : index
    %c1_46 = arith.constant 1 : index
    %c0_47 = arith.constant 0 : index
    %c0_48 = arith.constant 0 : index
    %63 = vector.load %arg2[%c2_45, %c1_46, %c0_47, %c0_48] : memref<3x3x8x4xbf16, #tpu.memory_space<vmem>>, vector<1x1x8x4xbf16>
    %64 = vector.shape_cast %63 : vector<1x1x8x4xbf16> to vector<8x4xbf16>
    %65 = arith.truncf %54 : vector<4x256xf32> to vector<4x256xbf16>
    %cst_49 = arith.constant dense<0.000000e+00> : vector<8x256xf32>
    %66 = tpu.matmul %64, %65, %cst_49 {dimension_numbers = #tpu.dot_dimension_numbers<[1], [0], [0], [1], [0, 0, 1, 1], [], []>} : vector<8x4xbf16>, vector<4x256xbf16>, vector<8x256xf32> -> vector<8x256xf32>
    %67 = arith.addf %62, %66 : vector<8x256xf32>
    %c255_i32_50 = arith.constant 255 : i32
    %68 = tpu.dynamic_rotate %54 by %c255_i32_50 dim 1 : vector<4x256xf32>, i32 -> vector<4x256xf32>
    %69 = vector.broadcast %3 : vector<1x256xf32> to vector<4x256xf32>
    %70 = arith.mulf %68, %69 : vector<4x256xf32>
    %c2_51 = arith.constant 2 : index
    %c2_52 = arith.constant 2 : index
    %c0_53 = arith.constant 0 : index
    %c0_54 = arith.constant 0 : index
    %71 = vector.load %arg2[%c2_51, %c2_52, %c0_53, %c0_54] : memref<3x3x8x4xbf16, #tpu.memory_space<vmem>>, vector<1x1x8x4xbf16>
    %72 = vector.shape_cast %71 : vector<1x1x8x4xbf16> to vector<8x4xbf16>
    %73 = arith.truncf %70 : vector<4x256xf32> to vector<4x256xbf16>
    %cst_55 = arith.constant dense<0.000000e+00> : vector<8x256xf32>
    %74 = tpu.matmul %72, %73, %cst_55 {dimension_numbers = #tpu.dot_dimension_numbers<[1], [0], [0], [1], [0, 0, 1, 1], [], []>} : vector<8x4xbf16>, vector<4x256xbf16>, vector<8x256xf32> -> vector<8x256xf32>
    %75 = arith.addf %67, %74 : vector<8x256xf32>
    %c0_56 = arith.constant 0 : index
    %c0_57 = arith.constant 0 : index
    %76 = vector.load %arg3[%c0_56, %c0_57] : memref<8x1xf32, #tpu.memory_space<vmem>>, vector<8x1xf32>
    %77 = vector.broadcast %76 : vector<8x1xf32> to vector<8x256xf32>
    %78 = arith.addf %75, %77 : vector<8x256xf32>
    %cst_58 = arith.constant 0.000000e+00 : f32
    %79 = vector.broadcast %cst_58 : f32 to vector<8x256xf32>
    %80 = arith.maximumf %78, %79 : vector<8x256xf32>
    %c16_i32_59 = arith.constant 16 : i32
    %81 = tpu.dynamic_rotate %80 by %c16_i32_59 dim 1 : vector<8x256xf32>, i32 -> vector<8x256xf32>
    %82 = vector.broadcast %0 : vector<1x256xf32> to vector<8x256xf32>
    %83 = arith.mulf %81, %82 : vector<8x256xf32>
    %c1_i32_60 = arith.constant 1 : i32
    %84 = tpu.dynamic_rotate %83 by %c1_i32_60 dim 1 : vector<8x256xf32>, i32 -> vector<8x256xf32>
    %85 = vector.broadcast %2 : vector<1x256xf32> to vector<8x256xf32>
    %86 = arith.mulf %84, %85 : vector<8x256xf32>
    %c0_61 = arith.constant 0 : index
    %c0_62 = arith.constant 0 : index
    %c0_63 = arith.constant 0 : index
    %c0_64 = arith.constant 0 : index
    %87 = vector.load %arg4[%c0_61, %c0_62, %c0_63, %c0_64] : memref<3x3x4x8xbf16, #tpu.memory_space<vmem>>, vector<1x1x4x8xbf16>
    %88 = vector.shape_cast %87 : vector<1x1x4x8xbf16> to vector<4x8xbf16>
    %89 = arith.truncf %86 : vector<8x256xf32> to vector<8x256xbf16>
    %cst_65 = arith.constant dense<0.000000e+00> : vector<4x256xf32>
    %90 = tpu.matmul %88, %89, %cst_65 {dimension_numbers = #tpu.dot_dimension_numbers<[1], [0], [0], [1], [0, 0, 1, 1], [], []>} : vector<4x8xbf16>, vector<8x256xbf16>, vector<4x256xf32> -> vector<4x256xf32>
    %c0_66 = arith.constant 0 : index
    %c1_67 = arith.constant 1 : index
    %c0_68 = arith.constant 0 : index
    %c0_69 = arith.constant 0 : index
    %91 = vector.load %arg4[%c0_66, %c1_67, %c0_68, %c0_69] : memref<3x3x4x8xbf16, #tpu.memory_space<vmem>>, vector<1x1x4x8xbf16>
    %92 = vector.shape_cast %91 : vector<1x1x4x8xbf16> to vector<4x8xbf16>
    %93 = arith.truncf %83 : vector<8x256xf32> to vector<8x256xbf16>
    %cst_70 = arith.constant dense<0.000000e+00> : vector<4x256xf32>
    %94 = tpu.matmul %92, %93, %cst_70 {dimension_numbers = #tpu.dot_dimension_numbers<[1], [0], [0], [1], [0, 0, 1, 1], [], []>} : vector<4x8xbf16>, vector<8x256xbf16>, vector<4x256xf32> -> vector<4x256xf32>
    %95 = arith.addf %90, %94 : vector<4x256xf32>
    %c255_i32_71 = arith.constant 255 : i32
    %96 = tpu.dynamic_rotate %83 by %c255_i32_71 dim 1 : vector<8x256xf32>, i32 -> vector<8x256xf32>
    %97 = vector.broadcast %3 : vector<1x256xf32> to vector<8x256xf32>
    %98 = arith.mulf %96, %97 : vector<8x256xf32>
    %c0_72 = arith.constant 0 : index
    %c2_73 = arith.constant 2 : index
    %c0_74 = arith.constant 0 : index
    %c0_75 = arith.constant 0 : index
    %99 = vector.load %arg4[%c0_72, %c2_73, %c0_74, %c0_75] : memref<3x3x4x8xbf16, #tpu.memory_space<vmem>>, vector<1x1x4x8xbf16>
    %100 = vector.shape_cast %99 : vector<1x1x4x8xbf16> to vector<4x8xbf16>
    %101 = arith.truncf %98 : vector<8x256xf32> to vector<8x256xbf16>
    %cst_76 = arith.constant dense<0.000000e+00> : vector<4x256xf32>
    %102 = tpu.matmul %100, %101, %cst_76 {dimension_numbers = #tpu.dot_dimension_numbers<[1], [0], [0], [1], [0, 0, 1, 1], [], []>} : vector<4x8xbf16>, vector<8x256xbf16>, vector<4x256xf32> -> vector<4x256xf32>
    %103 = arith.addf %95, %102 : vector<4x256xf32>
    %c1_i32_77 = arith.constant 1 : i32
    %104 = tpu.dynamic_rotate %80 by %c1_i32_77 dim 1 : vector<8x256xf32>, i32 -> vector<8x256xf32>
    %105 = vector.broadcast %2 : vector<1x256xf32> to vector<8x256xf32>
    %106 = arith.mulf %104, %105 : vector<8x256xf32>
    %c1_78 = arith.constant 1 : index
    %c0_79 = arith.constant 0 : index
    %c0_80 = arith.constant 0 : index
    %c0_81 = arith.constant 0 : index
    %107 = vector.load %arg4[%c1_78, %c0_79, %c0_80, %c0_81] : memref<3x3x4x8xbf16, #tpu.memory_space<vmem>>, vector<1x1x4x8xbf16>
    %108 = vector.shape_cast %107 : vector<1x1x4x8xbf16> to vector<4x8xbf16>
    %109 = arith.truncf %106 : vector<8x256xf32> to vector<8x256xbf16>
    %cst_82 = arith.constant dense<0.000000e+00> : vector<4x256xf32>
    %110 = tpu.matmul %108, %109, %cst_82 {dimension_numbers = #tpu.dot_dimension_numbers<[1], [0], [0], [1], [0, 0, 1, 1], [], []>} : vector<4x8xbf16>, vector<8x256xbf16>, vector<4x256xf32> -> vector<4x256xf32>
    %111 = arith.addf %103, %110 : vector<4x256xf32>
    %c1_83 = arith.constant 1 : index
    %c1_84 = arith.constant 1 : index
    %c0_85 = arith.constant 0 : index
    %c0_86 = arith.constant 0 : index
    %112 = vector.load %arg4[%c1_83, %c1_84, %c0_85, %c0_86] : memref<3x3x4x8xbf16, #tpu.memory_space<vmem>>, vector<1x1x4x8xbf16>
    %113 = vector.shape_cast %112 : vector<1x1x4x8xbf16> to vector<4x8xbf16>
    %114 = arith.truncf %80 : vector<8x256xf32> to vector<8x256xbf16>
    %cst_87 = arith.constant dense<0.000000e+00> : vector<4x256xf32>
    %115 = tpu.matmul %113, %114, %cst_87 {dimension_numbers = #tpu.dot_dimension_numbers<[1], [0], [0], [1], [0, 0, 1, 1], [], []>} : vector<4x8xbf16>, vector<8x256xbf16>, vector<4x256xf32> -> vector<4x256xf32>
    %116 = arith.addf %111, %115 : vector<4x256xf32>
    %c255_i32_88 = arith.constant 255 : i32
    %117 = tpu.dynamic_rotate %80 by %c255_i32_88 dim 1 : vector<8x256xf32>, i32 -> vector<8x256xf32>
    %118 = vector.broadcast %3 : vector<1x256xf32> to vector<8x256xf32>
    %119 = arith.mulf %117, %118 : vector<8x256xf32>
    %c1_89 = arith.constant 1 : index
    %c2_90 = arith.constant 2 : index
    %c0_91 = arith.constant 0 : index
    %c0_92 = arith.constant 0 : index
    %120 = vector.load %arg4[%c1_89, %c2_90, %c0_91, %c0_92] : memref<3x3x4x8xbf16, #tpu.memory_space<vmem>>, vector<1x1x4x8xbf16>
    %121 = vector.shape_cast %120 : vector<1x1x4x8xbf16> to vector<4x8xbf16>
    %122 = arith.truncf %119 : vector<8x256xf32> to vector<8x256xbf16>
    %cst_93 = arith.constant dense<0.000000e+00> : vector<4x256xf32>
    %123 = tpu.matmul %121, %122, %cst_93 {dimension_numbers = #tpu.dot_dimension_numbers<[1], [0], [0], [1], [0, 0, 1, 1], [], []>} : vector<4x8xbf16>, vector<8x256xbf16>, vector<4x256xf32> -> vector<4x256xf32>
    %124 = arith.addf %116, %123 : vector<4x256xf32>
    %c240_i32_94 = arith.constant 240 : i32
    %125 = tpu.dynamic_rotate %80 by %c240_i32_94 dim 1 : vector<8x256xf32>, i32 -> vector<8x256xf32>
    %126 = vector.broadcast %1 : vector<1x256xf32> to vector<8x256xf32>
    %127 = arith.mulf %125, %126 : vector<8x256xf32>
    %c1_i32_95 = arith.constant 1 : i32
    %128 = tpu.dynamic_rotate %127 by %c1_i32_95 dim 1 : vector<8x256xf32>, i32 -> vector<8x256xf32>
    %129 = vector.broadcast %2 : vector<1x256xf32> to vector<8x256xf32>
    %130 = arith.mulf %128, %129 : vector<8x256xf32>
    %c2_96 = arith.constant 2 : index
    %c0_97 = arith.constant 0 : index
    %c0_98 = arith.constant 0 : index
    %c0_99 = arith.constant 0 : index
    %131 = vector.load %arg4[%c2_96, %c0_97, %c0_98, %c0_99] : memref<3x3x4x8xbf16, #tpu.memory_space<vmem>>, vector<1x1x4x8xbf16>
    %132 = vector.shape_cast %131 : vector<1x1x4x8xbf16> to vector<4x8xbf16>
    %133 = arith.truncf %130 : vector<8x256xf32> to vector<8x256xbf16>
    %cst_100 = arith.constant dense<0.000000e+00> : vector<4x256xf32>
    %134 = tpu.matmul %132, %133, %cst_100 {dimension_numbers = #tpu.dot_dimension_numbers<[1], [0], [0], [1], [0, 0, 1, 1], [], []>} : vector<4x8xbf16>, vector<8x256xbf16>, vector<4x256xf32> -> vector<4x256xf32>
    %135 = arith.addf %124, %134 : vector<4x256xf32>
    %c2_101 = arith.constant 2 : index
    %c1_102 = arith.constant 1 : index
    %c0_103 = arith.constant 0 : index
    %c0_104 = arith.constant 0 : index
    %136 = vector.load %arg4[%c2_101, %c1_102, %c0_103, %c0_104] : memref<3x3x4x8xbf16, #tpu.memory_space<vmem>>, vector<1x1x4x8xbf16>
    %137 = vector.shape_cast %136 : vector<1x1x4x8xbf16> to vector<4x8xbf16>
    %138 = arith.truncf %127 : vector<8x256xf32> to vector<8x256xbf16>
    %cst_105 = arith.constant dense<0.000000e+00> : vector<4x256xf32>
    %139 = tpu.matmul %137, %138, %cst_105 {dimension_numbers = #tpu.dot_dimension_numbers<[1], [0], [0], [1], [0, 0, 1, 1], [], []>} : vector<4x8xbf16>, vector<8x256xbf16>, vector<4x256xf32> -> vector<4x256xf32>
    %140 = arith.addf %135, %139 : vector<4x256xf32>
    %c255_i32_106 = arith.constant 255 : i32
    %141 = tpu.dynamic_rotate %127 by %c255_i32_106 dim 1 : vector<8x256xf32>, i32 -> vector<8x256xf32>
    %142 = vector.broadcast %3 : vector<1x256xf32> to vector<8x256xf32>
    %143 = arith.mulf %141, %142 : vector<8x256xf32>
    %c2_107 = arith.constant 2 : index
    %c2_108 = arith.constant 2 : index
    %c0_109 = arith.constant 0 : index
    %c0_110 = arith.constant 0 : index
    %144 = vector.load %arg4[%c2_107, %c2_108, %c0_109, %c0_110] : memref<3x3x4x8xbf16, #tpu.memory_space<vmem>>, vector<1x1x4x8xbf16>
    %145 = vector.shape_cast %144 : vector<1x1x4x8xbf16> to vector<4x8xbf16>
    %146 = arith.truncf %143 : vector<8x256xf32> to vector<8x256xbf16>
    %cst_111 = arith.constant dense<0.000000e+00> : vector<4x256xf32>
    %147 = tpu.matmul %145, %146, %cst_111 {dimension_numbers = #tpu.dot_dimension_numbers<[1], [0], [0], [1], [0, 0, 1, 1], [], []>} : vector<4x8xbf16>, vector<8x256xbf16>, vector<4x256xf32> -> vector<4x256xf32>
    %148 = arith.addf %140, %147 : vector<4x256xf32>
    %c0_112 = arith.constant 0 : index
    %c0_113 = arith.constant 0 : index
    %149 = vector.load %arg5[%c0_112, %c0_113] : memref<4x1xf32, #tpu.memory_space<vmem>>, vector<4x1xf32>
    %150 = vector.broadcast %149 : vector<4x1xf32> to vector<4x256xf32>
    %151 = arith.addf %148, %150 : vector<4x256xf32>
    %152 = arith.addf %5, %151 : vector<4x256xf32>
    %c0_114 = arith.constant 0 : index
    %c0_115 = arith.constant 0 : index
    %c0_116 = arith.constant 0 : index
    %153 = vector.load %arg7[%c0_114, %c0_115, %c0_116] : memref<1x4x256xf32, #tpu.memory_space<vmem>>, vector<1x4x256xf32>
    %154 = vector.shape_cast %153 : vector<1x4x256xf32> to vector<4x256xf32>
    %155 = vector.shape_cast %152 : vector<4x256xf32> to vector<1x4x256xf32>
    tpu.vector_store %arg7[%c0_114, %c0_115, %c0_116], %155 {strides = array<i32>} : memref<1x4x256xf32, #tpu.memory_space<vmem>>, vector<1x4x256xf32>,
    return
  }
  func.func @transform_0(%arg0: i32) -> (i32, i32, i32) {
    %c0_i32 = arith.constant 0 : i32
    %c0_i32_0 = arith.constant 0 : i32
    %c0_i32_1 = arith.constant 0 : i32
    return %arg0, %c0_i32, %c0_i32_0 : i32, i32, i32
  }
  func.func @transform_1(%arg0: i32) -> (i32, i32, i32, i32) {
    %c0_i32 = arith.constant 0 : i32
    %c0_i32_0 = arith.constant 0 : i32
    %c0_i32_1 = arith.constant 0 : i32
    %c0_i32_2 = arith.constant 0 : i32
    %c0_i32_3 = arith.constant 0 : i32
    return %c0_i32, %c0_i32_0, %c0_i32_1, %c0_i32_2 : i32, i32, i32, i32
  }
  func.func @transform_2(%arg0: i32) -> (i32, i32) {
    %c0_i32 = arith.constant 0 : i32
    %c0_i32_0 = arith.constant 0 : i32
    %c0_i32_1 = arith.constant 0 : i32
    return %c0_i32, %c0_i32_0 : i32, i32
  }
  func.func @transform_3(%arg0: i32) -> (i32, i32, i32, i32) {
    %c0_i32 = arith.constant 0 : i32
    %c0_i32_0 = arith.constant 0 : i32
    %c0_i32_1 = arith.constant 0 : i32
    %c0_i32_2 = arith.constant 0 : i32
    %c0_i32_3 = arith.constant 0 : i32
    return %c0_i32, %c0_i32_0, %c0_i32_1, %c0_i32_2 : i32, i32, i32, i32
  }
  func.func @transform_4(%arg0: i32) -> (i32, i32) {
    %c0_i32 = arith.constant 0 : i32
    %c0_i32_0 = arith.constant 0 : i32
    %c0_i32_1 = arith.constant 0 : i32
    return %c0_i32, %c0_i32_0 : i32, i32
  }
  func.func @transform_5(%arg0: i32) -> (i32, i32) {
    %c0_i32 = arith.constant 0 : i32
    %c0_i32_0 = arith.constant 0 : i32
    %c0_i32_1 = arith.constant 0 : i32
    return %c0_i32, %c0_i32_0 : i32, i32
  }
  func.func @transform_6(%arg0: i32) -> (i32, i32, i32) {
    %c0_i32 = arith.constant 0 : i32
    %c0_i32_0 = arith.constant 0 : i32
    %c0_i32_1 = arith.constant 0 : i32
    return %arg0, %c0_i32, %c0_i32_0 : i32, i32, i32
  }
}

</mosaic_0001>

<llo_original>
// kernel: shake_shake_block_forward.1
$region0: #{shake_shake_block_forward.1}
  #allocation0 [shape = 'u32[]', space=smem, size = 0x4, offset = 0x4, fixed_abs, tag = 'smem constant byte address 0x4 - core index']
  #allocation1 [shape = 'u32[144,128]{1,0:T(1,128)}', space=vmem, size = 0x12000, scoped, tag = 'internal scratch']
  %s0 = inlined_call_operand.vmem [shape: f32[2,4,256], index: 0, kind: input, shape index: {}]
  %s1 = inlined_call_operand.vmem [shape: bf16[3,3,8,4], index: 1, kind: input, shape index: {}]
  %s2 = inlined_call_operand.vmem [shape: f32[8,1], index: 2, kind: input, shape index: {}]
  %s3 = inlined_call_operand.vmem [shape: bf16[3,3,4,8], index: 3, kind: input, shape index: {}]
  %s4 = inlined_call_operand.vmem [shape: f32[4,1], index: 4, kind: input, shape index: {}]
  %s5 = inlined_call_operand.vmem [shape: f32[4,256], index: 5, kind: input, shape index: {}]
  %s6 = inlined_call_operand.vmem [shape: f32[2,4,256], index: 6, kind: output, shape index: {}]
  %s7 = sld [smem:[#allocation0]]
  $region57: #{shake_shake_block_forward.1} parent=0
    _
  %s9 = ssub.s32 1, %s7
  %s10 = scalar_select 0, %s9, %s7
  loop: start=0, step=1, limit=4
  $region2: #{shake_shake_block_forward.1} parent=0 // loop_pre_header
    _
  $region3: #{shake_shake_block_forward.1} parent=0 // loop_header
    %s12 = sphi 0, %s16
    %p13 = scmp.ge.s32.totalorder %s12, 4
    %s22 = sphi 0, %s24
    %s25 = sphi 0, %s22
    %s26 = sphi 0, %s25
    %s42 = sphi 0, %s26
    %s46 = sphi 0, %s46
    %s48 = sphi 0, %s46
    %s49 = sphi 0, %s48
    %s63 = sphi 0, %s49
    %s67 = sphi 0, %s67
    %s69 = sphi 0, %s67
    %s70 = sphi 0, %s69
    %s84 = sphi 0, %s70
    %s88 = sphi 0, %s88
    %s90 = sphi 0, %s88
    %s91 = sphi 0, %s90
    %s105 = sphi 0, %s91
    %s109 = sphi 0, %s109
    %s111 = sphi 0, %s109
    %s112 = sphi 0, %s111
    %s126 = sphi 0, %s112
    %s130 = sphi 0, %s130
    %s132 = sphi 0, %s130
    %s133 = sphi 0, %s132
    %s147 = sphi 0, %s133
    %s153 = sphi 0, %s155
    %s156 = sphi 0, %s153
    %s157 = sphi 0, %s156
    %s173 = sphi 0, %s157
  $region4: #{shake_shake_block_forward.1} parent=0 // loop_header_branch
    %15 = sbr.rel (%p13) target = $region8
  $region5: #{shake_shake_block_forward.1} parent=0 // loop_body
    %s17 = ssub.s32 %s12, 1
    %s18 = ssub.s32 %s12, 2
    %s19 = sadd.s32 %s12, 1
    %s20 = ssub.s32 %s12, %s19
    %p21 = scmp.eq.s32.totalorder %s20, 0
    %s23 = sadd.s32 %s22, 1
    %s24 = scalar_select %p21, %s22, %s23
    %p27 = pneg %p21
    %p28 = scmp.eq.s32.totalorder %s12, 1
    %p29 = por %p27, %p28
    %p30 = scmp.ne.s32.totalorder %s22, %s25
    %p31 = scmp.eq.s32.totalorder %s12, 0
    %p32 = por %p30, %p31
    %p33 = scmp.ne.s32.totalorder %s22, %s25
    %p34 = scmp.eq.s32.totalorder %s17, 1
    %p35 = por %p33, %p34
    %p36 = scmp.ne.s32.totalorder %s25, %s26
    %p37 = scmp.eq.s32.totalorder %s17, 0
    %p38 = por %p36, %p37
    %p39 = scmp.ne.s32.totalorder %s25, %s26
    %p40 = scmp.eq.s32.totalorder %s18, 1
    %p41 = por %p39, %p40
    %p43 = scmp.ne.s32.totalorder %s26, %s42
    %p44 = scmp.eq.s32.totalorder %s18, 0
    %p45 = por %p43, %p44
    %s47 = sadd.s32 %s46, 1
    %p50 = scmp.eq.s32.totalorder %s12, 1
    %p51 = scmp.ne.s32.totalorder %s46, %s48
    %p52 = scmp.eq.s32.totalorder %s12, 0
    %p53 = por %p51, %p52
    %p54 = scmp.ne.s32.totalorder %s46, %s48
    %p55 = scmp.eq.s32.totalorder %s17, 1
    %p56 = por %p54, %p55
    %p57 = scmp.ne.s32.totalorder %s48, %s49
    %p58 = scmp.eq.s32.totalorder %s17, 0
    %p59 = por %p57, %p58
    %p60 = scmp.ne.s32.totalorder %s48, %s49
    %p61 = scmp.eq.s32.totalorder %s18, 1
    %p62 = por %p60, %p61
    %p64 = scmp.ne.s32.totalorder %s49, %s63
    %p65 = scmp.eq.s32.totalorder %s18, 0
    %p66 = por %p64, %p65
    %s68 = sadd.s32 %s67, 1
    %p71 = scmp.eq.s32.totalorder %s12, 1
    %p72 = scmp.ne.s32.totalorder %s67, %s69
    %p73 = scmp.eq.s32.totalorder %s12, 0
    %p74 = por %p72, %p73
    %p75 = scmp.ne.s32.totalorder %s67, %s69
    %p76 = scmp.eq.s32.totalorder %s17, 1
    %p77 = por %p75, %p76
    %p78 = scmp.ne.s32.totalorder %s69, %s70
    %p79 = scmp.eq.s32.totalorder %s17, 0
    %p80 = por %p78, %p79
    %p81 = scmp.ne.s32.totalorder %s69, %s70
    %p82 = scmp.eq.s32.totalorder %s18, 1
    %p83 = por %p81, %p82
    %p85 = scmp.ne.s32.totalorder %s70, %s84
    %p86 = scmp.eq.s32.totalorder %s18, 0
    %p87 = por %p85, %p86
    %s89 = sadd.s32 %s88, 1
    %p92 = scmp.eq.s32.totalorder %s12, 1
    %p93 = scmp.ne.s32.totalorder %s88, %s90
    %p94 = scmp.eq.s32.totalorder %s12, 0
    %p95 = por %p93, %p94
    %p96 = scmp.ne.s32.totalorder %s88, %s90
    %p97 = scmp.eq.s32.totalorder %s17, 1
    %p98 = por %p96, %p97
    %p99 = scmp.ne.s32.totalorder %s90, %s91
    %p100 = scmp.eq.s32.totalorder %s17, 0
    %p101 = por %p99, %p100
    %p102 = scmp.ne.s32.totalorder %s90, %s91
    %p103 = scmp.eq.s32.totalorder %s18, 1
    %p104 = por %p102, %p103
    %p106 = scmp.ne.s32.totalorder %s91, %s105
    %p107 = scmp.eq.s32.totalorder %s18, 0
    %p108 = por %p106, %p107
    %s110 = sadd.s32 %s109, 1
    %p113 = scmp.eq.s32.totalorder %s12, 1
    %p114 = scmp.ne.s32.totalorder %s109, %s111
    %p115 = scmp.eq.s32.totalorder %s12, 0
    %p116 = por %p114, %p115
    %p117 = scmp.ne.s32.totalorder %s109, %s111
    %p118 = scmp.eq.s32.totalorder %s17, 1
    %p119 = por %p117, %p118
    %p120 = scmp.ne.s32.totalorder %s111, %s112
    %p121 = scmp.eq.s32.totalorder %s17, 0
    %p122 = por %p120, %p121
    %p123 = scmp.ne.s32.totalorder %s111, %s112
    %p124 = scmp.eq.s32.totalorder %s18, 1
    %p125 = por %p123, %p124
    %p127 = scmp.ne.s32.totalorder %s112, %s126
    %p128 = scmp.eq.s32.totalorder %s18, 0
    %p129 = por %p127, %p128
    %s131 = sadd.s32 %s130, 1
    %p134 = scmp.eq.s32.totalorder %s12, 1
    %p135 = scmp.ne.s32.totalorder %s130, %s132
    %p136 = scmp.eq.s32.totalorder %s12, 0
    %p137 = por %p135, %p136
    %p138 = scmp.ne.s32.totalorder %s130, %s132
    %p139 = scmp.eq.s32.totalorder %s17, 1
    %p140 = por %p138, %p139
    %p141 = scmp.ne.s32.totalorder %s132, %s133
    %p142 = scmp.eq.s32.totalorder %s17, 0
    %p143 = por %p141, %p142
    %p144 = scmp.ne.s32.totalorder %s132, %s133
    %p145 = scmp.eq.s32.totalorder %s18, 1
    %p146 = por %p144, %p145
    %p148 = scmp.ne.s32.totalorder %s133, %s147
    %p149 = scmp.eq.s32.totalorder %s18, 0
    %p150 = por %p148, %p149
    %s151 = ssub.s32 %s12, %s19
    %p152 = scmp.eq.s32.totalorder %s151, 0
    %s154 = sadd.s32 %s153, 1
    %s155 = scalar_select %p152, %s153, %s154
    %p158 = pneg %p152
    %p159 = scmp.eq.s32.totalorder %s12, 1
    %p160 = por %p158, %p159
    %p161 = scmp.ne.s32.totalorder %s153, %s156
    %p162 = scmp.eq.s32.totalorder %s12, 0
    %p163 = por %p161, %p162
    %p164 = scmp.ne.s32.totalorder %s153, %s156
    %p165 = scmp.eq.s32.totalorder %s17, 1
    %p166 = por %p164, %p165
    %p167 = scmp.ne.s32.totalorder %s156, %s157
    %p168 = scmp.eq.s32.totalorder %s17, 0
    %p169 = por %p167, %p168
    %p170 = scmp.ne.s32.totalorder %s156, %s157
    %p171 = scmp.eq.s32.totalorder %s18, 1
    %p172 = por %p170, %p171
    %p174 = scmp.ne.s32.totalorder %s157, %s173
    %p175 = scmp.eq.s32.totalorder %s18, 0
    %p176 = por %p174, %p175
    %p177 = scmp.le.s32.totalorder 1, %s12
    %p178 = scmp.lt.s32.totalorder %s12, 3
    %p179 = pnand %p177, %p178
    %p180 = pneg %p179
    // Predicated region
    $region9: #{shake_shake_block_forward.1} parent=5 // pred_check
      _
    $region10: #{shake_shake_block_forward.1} parent=5 // pred_check_branch
      %182 = sbr.rel (%p179) target = $region12
    $region11: #{shake_shake_block_forward.1} parent=5 // pred_region
      %s183 = ssub.s32 %s12, 1
      // Predicated region
      $region13: #{shake_shake_block_forward.1} parent=11 // pred_check
        %p184 = pneg %p59
      $region14: #{shake_shake_block_forward.1} parent=11 // pred_check_branch
        %186 = sbr.rel (%p184) target = $region16
      $region15: #{shake_shake_block_forward.1} parent=11 // pred_region
        _
      $region16: #{shake_shake_block_forward.1} parent=11 // pred_fallthru
        _
      // Predicated region
      $region17: #{shake_shake_block_forward.1} parent=11 // pred_check
        %p187 = pneg %p80
      $region18: #{shake_shake_block_forward.1} parent=11 // pred_check_branch
        %189 = sbr.rel (%p187) target = $region20
      $region19: #{shake_shake_block_forward.1} parent=11 // pred_region
        _
      $region20: #{shake_shake_block_forward.1} parent=11 // pred_fallthru
        _
      // Predicated region
      $region21: #{shake_shake_block_forward.1} parent=11 // pred_check
        %p190 = pneg %p101
      $region22: #{shake_shake_block_forward.1} parent=11 // pred_check_branch
        %192 = sbr.rel (%p190) target = $region24
      $region23: #{shake_shake_block_forward.1} parent=11 // pred_region
        _
      $region24: #{shake_shake_block_forward.1} parent=11 // pred_fallthru
        _
      // Predicated region
      $region25: #{shake_shake_block_forward.1} parent=11 // pred_check
        %p193 = pneg %p122
      $region26: #{shake_shake_block_forward.1} parent=11 // pred_check_branch
        %195 = sbr.rel (%p193) target = $region28
      $region27: #{shake_shake_block_forward.1} parent=11 // pred_region
        _
      $region28: #{shake_shake_block_forward.1} parent=11 // pred_fallthru
        _
      // Predicated region
      $region29: #{shake_shake_block_forward.1} parent=11 // pred_check
        %p196 = pneg %p143
      $region30: #{shake_shake_block_forward.1} parent=11 // pred_check_branch
        %198 = sbr.rel (%p196) target = $region32
      $region31: #{shake_shake_block_forward.1} parent=11 // pred_region
        _
      $region32: #{shake_shake_block_forward.1} parent=11 // pred_fallthru
        _
    $region12: #{shake_shake_block_forward.1} parent=5 // pred_fallthru
      _
    %p199 = scmp.lt.s32.totalorder %s12, 2
    // Predicated region
    $region33: #{shake_shake_block_forward.1} parent=5 // pred_check
      %p200 = pneg %p199
    $region34: #{shake_shake_block_forward.1} parent=5 // pred_check_branch
      %202 = sbr.rel (%p200) target = $region36
    $region35: #{shake_shake_block_forward.1} parent=5 // pred_region
      // Predicated region
      $region37: #{shake_shake_block_forward.1} parent=35 // pred_check
        %p203 = pneg %p32
      $region38: #{shake_shake_block_forward.1} parent=35 // pred_check_branch
        %205 = sbr.rel (%p203) target = $region40
      $region39: #{shake_shake_block_forward.1} parent=35 // pred_region
        %p206 = scmp.lt.s32.totalorder %s12, 1
        %s207 = scalar_select %p206, %s12, 1
        %s208 = smul.addr %s207, 2
        %s209 = smul.addr %s208, 4
        %s210 = scalar_lea.vmem %s0, %s209
      $region40: #{shake_shake_block_forward.1} parent=35 // pred_fallthru
        _
    $region36: #{shake_shake_block_forward.1} parent=5 // pred_fallthru
      _
    %p211 = scmp.le.s32.totalorder 1, %s12
    %p212 = scmp.lt.s32.totalorder %s12, 3
    %p213 = pnand %p211, %p212
    %p214 = pneg %p213
    // Predicated region
    $region41: #{shake_shake_block_forward.1} parent=5 // pred_check
      _
    $region42: #{shake_shake_block_forward.1} parent=5 // pred_check_branch
      %216 = sbr.rel (%p213) target = $region44
    $region43: #{shake_shake_block_forward.1} parent=5 // pred_region
      %s217 = ssub.s32 %s12, 1
      %p218 = scmp.lt.s32.totalorder %s17, 1
      %s219 = scalar_select %p218, %s17, 1
      %s220 = smul.addr %s219, 2
      %s221 = smul.addr %s220, 4
      %s222 = scalar_lea.vmem %s0, %s221
      %p223 = pneg %p38
      %p224 = pneg %p35
      %p225 = pneg %p59
      %p226 = pneg %p56
      %p227 = pneg %p80
      %p228 = pneg %p77
      %p229 = pneg %p101
      %p230 = pneg %p98
      %p231 = pneg %p122
      %p232 = pneg %p119
      %p233 = pneg %p143
      %p234 = pneg %p140
      %p235 = pneg %p169
      %p236 = pneg %p166
      %p237 = scmp.lt.s32.totalorder %s17, 1
      %s238 = scalar_select %p237, %s17, 1
      %s239 = smul.addr %s238, 2
      %s240 = smul.addr %s239, 4
      %s241 = scalar_lea.vmem %s6, %s240
      %p242 = scmp.lt.s32.totalorder %s17, 1
      %s243 = scalar_select %p242, %s17, 1
      %s244 = smul.addr %s243, 2
      %s245 = smul.addr %s244, 4
      %s246 = scalar_lea.vmem %s0, %s245
      %p247 = scmp.lt.s32.totalorder %s17, 1
      %s248 = scalar_select %p247, %s17, 1
      %s249 = smul.addr %s248, 2
      %s250 = smul.addr %s249, 4
      %s251 = scalar_lea.vmem %s6, %s250
      %v253 = vld [vmem:[%s5] ss:$4 sm:$0x3]
      %s254 = scalar_lea.vmem %s5, 1
      %v255 = vld [vmem:[%s254] ss:$4 sm:$0x3]
      %s256 = scalar_lea.vmem %s5, 2
      %v257 = vld [vmem:[%s256] ss:$4 sm:$0x3]
      %s258 = scalar_lea.vmem %s5, 3
      %v259 = vld [vmem:[%s258] ss:$4 sm:$0x3]
      %v260 = vld [vmem:[%s246] sm:$0xff]
      %v261 = vmax.f32 %v260, 0.0
      %v263 = vcombine.high %v261, %v261
      %265 = vrot.lane.b32.xlu0 %v261, 16
      %v266 = vpop.permute.xlu0 %265
      %267 = vrot.lane.b32.xlu0 %v263, 16
      %v268 = vpop.permute.xlu0 %267
      %v269 = vlaneseq
      %v270 = vand.u32 %v269, 127
      %vm271 = vcmp.lt.s32.totalorder %v270, 16
      %v272 = vsel %vm271, %v266, %v268
      %v273 = vsel %vm271, %v268, %v266
      %v275 = vlaneseq
      %v276 = vshrl.u32 %v275, 7
      %v277 = vsub.s32 0, %v276
      %v278 = vrot.slane %v253, %v277
      %v279 = vlaneseq
      %v280 = vshrl.u32 %v279, 7
      %v281 = vsub.s32 1, %v280
      %v282 = vrot.slane %v253, %v281
      %v285 = vmul.f32 %v273, %v278
      %v286 = vmul.f32 %v272, %v282
      %287 = vrot.lane.b32.xlu0 %v285, 1
      %v288 = vpop.permute.xlu0 %287
      %289 = vrot.lane.b32.xlu0 %v286, 1
      %v290 = vpop.permute.xlu0 %289
      %vm291 = vcmp.lt.s32.totalorder %v270, 1
      %v292 = vsel %vm291, %v288, %v290
      %v293 = vsel %vm291, %v290, %v288
      %v295 = vlaneseq
      %v296 = vshrl.u32 %v295, 7
      %v297 = vsub.s32 0, %v296
      %v298 = vrot.slane %v257, %v297
      %v299 = vlaneseq
      %v300 = vshrl.u32 %v299, 7
      %v301 = vsub.s32 1, %v300
      %v302 = vrot.slane %v257, %v301
      %v305 = vmul.f32 %v293, %v298
      %v306 = vmul.f32 %v292, %v302
      %v307 = vld [vmem:[%s1] sm:$0xf]
      %v308 = vpack.c.bf16 %v305, %v305
      %v309 = vpack.c.bf16 %v306, %v306
      %s310 = scalar_lea.vmem %s1, 4
      %v311 = vld [vmem:[%s310] sm:$0xf]
      %v312 = vpack.c.bf16 %v285, %v285
      %v313 = vpack.c.bf16 %v286, %v286
      %vm314 = vcmask 31744
      %v316 = vsel %vm314, %v311, 0
      %vm318 = vcmask 1041408
      %v320 = vsel %vm318, %v312, 0
      %v323 = vsel %vm318, %v313, 0
      %325 = vmatprep.subr.bf16.mxu0 0
      %326 = vmatpush1.bf16.msra.mxu0 0
      %327 = vmatprep.subr.bf16.mxu0 0
      %328 = vmatpush1.bf16.msra.mxu0 0
      %329 = vmatprep.subr.bf16.mxu0 0
      %330 = vmatpush1.bf16.msra.mxu0 0
      %331 = vmatprep.subr.bf16.mxu0 0
      %332 = vmatpush1.bf16.msra.mxu0 0
      %333 = vmatprep.subr.bf16.mxu0 0
      %334 = vmatpush1.bf16.msra.mxu0 0
      %335 = vmatprep.subr.bf16.mxu0 0
      %336 = vmatpush1.bf16.msra.mxu0 0
      %337 = vmatprep.subr.bf16.mxu0 0
      %338 = vmatpush1.bf16.msra.mxu0 0
      %339 = vmatprep.subr.bf16.mxu0 %v323
      %340 = vmatpush1.bf16.msra.mxu0 %v320
      %341 = vmatprep.subr.bf16.mxu0 0
      %342 = vmatpush2.bf16.msra.mxu0 0
      %343 = vmatprep.subr.bf16.mxu0 0
      %344 = vmatpush2.bf16.msra.mxu0 0
      %345 = vmatprep.subr.bf16.mxu0 0
      %346 = vmatpush2.bf16.msra.mxu0 0
      %347 = vmatprep.subr.bf16.mxu0 0
      %348 = vmatpush2.bf16.msra.mxu0 0
      %349 = vmatprep.subr.bf16.mxu0 0
      %350 = vmatpush2.bf16.msra.mxu0 0
      %351 = vmatprep.subr.bf16.mxu0 0
      %352 = vmatpush2.bf16.msra.mxu0 0
      %353 = vmatprep.subr.bf16.mxu0 0
      %354 = vmatpush2.bf16.msra.mxu0 0
      %355 = vmatprep.subr.bf16.mxu0 0
      %356 = vmatpush2.bf16.msra.mxu0 0
      %357 = vmatprep.mubr.bf16.mxu0 0
      %358 = vmatmul.mubr.bf16.gmra.mxu0 %v316
      %v359 = vpop.f32.mrf.mxu0
      %v360 = vadd.f32 0.0, %v359
      %v361 = vpop.f32.mrf.mxu0
      %v362 = vadd.f32 0.0, %v361
      %v363 = vpop.f32.mrf.mxu0
      %v364 = vpop.f32.mrf.mxu0
      %365 = vdwg.mxu0
      %v367 = vsel %vm314, %v307, 0
      %v370 = vsel %vm318, %v308, 0
      %v373 = vsel %vm318, %v309, 0
      %375 = vmatprep.subr.bf16.mxu0 0
      %376 = vmatpush1.bf16.msra.mxu0 0
      %377 = vmatprep.subr.bf16.mxu0 0
      %378 = vmatpush1.bf16.msra.mxu0 0
      %379 = vmatprep.subr.bf16.mxu0 0
      %380 = vmatpush1.bf16.msra.mxu0 0
      %381 = vmatprep.subr.bf16.mxu0 0
      %382 = vmatpush1.bf16.msra.mxu0 0
      %383 = vmatprep.subr.bf16.mxu0 0
      %384 = vmatpush1.bf16.msra.mxu0 0
      %385 = vmatprep.subr.bf16.mxu0 0
      %386 = vmatpush1.bf16.msra.mxu0 0
      %387 = vmatprep.subr.bf16.mxu0 0
      %388 = vmatpush1.bf16.msra.mxu0 0
      %389 = vmatprep.subr.bf16.mxu0 %v373
      %390 = vmatpush1.bf16.msra.mxu0 %v370
      %391 = vmatprep.subr.bf16.mxu0 0
      %392 = vmatpush2.bf16.msra.mxu0 0
      %393 = vmatprep.subr.bf16.mxu0 0
      %394 = vmatpush2.bf16.msra.mxu0 0
      %395 = vmatprep.subr.bf16.mxu0 0
      %396 = vmatpush2.bf16.msra.mxu0 0
      %397 = vmatprep.subr.bf16.mxu0 0
      %398 = vmatpush2.bf16.msra.mxu0 0
      %399 = vmatprep.subr.bf16.mxu0 0
      %400 = vmatpush2.bf16.msra.mxu0 0
      %401 = vmatprep.subr.bf16.mxu0 0
      %402 = vmatpush2.bf16.msra.mxu0 0
      %403 = vmatprep.subr.bf16.mxu0 0
      %404 = vmatpush2.bf16.msra.mxu0 0
      %405 = vmatprep.subr.bf16.mxu0 0
      %406 = vmatpush2.bf16.msra.mxu0 0
      %407 = vmatprep.mubr.bf16.mxu0 0
      %408 = vmatmul.mubr.bf16.gmra.mxu0 %v367
      %v409 = vpop.f32.mrf.mxu0
      %v410 = vadd.f32 %v360, %v409
      %v411 = vpop.f32.mrf.mxu0
      %v412 = vadd.f32 %v362, %v411
      %v413 = vpop.f32.mrf.mxu0
      %v414 = vpop.f32.mrf.mxu0
      %415 = vdwg.mxu0
      %416 = vrot.lane.b32.xlu0 %v285, 127
      %v417 = vpop.permute.xlu0 %416
      %418 = vrot.lane.b32.xlu0 %v286, 127
      %v419 = vpop.permute.xlu0 %418
      %vm420 = vcmp.lt.s32.totalorder %v270, 127
      %v421 = vsel %vm420, %v417, %v419
      %v422 = vsel %vm420, %v419, %v417
      %v424 = vlaneseq
      %v425 = vshrl.u32 %v424, 7
      %v426 = vsub.s32 0, %v425
      %v427 = vrot.slane %v259, %v426
      %v428 = vlaneseq
      %v429 = vshrl.u32 %v428, 7
      %v430 = vsub.s32 1, %v429
      %v431 = vrot.slane %v259, %v430
      %v434 = vmul.f32 %v421, %v427
      %v435 = vmul.f32 %v422, %v431
      %s436 = scalar_lea.vmem %s1, 8
      %v437 = vld [vmem:[%s436] sm:$0xf]
      %v438 = vpack.c.bf16 %v434, %v434
      %v439 = vpack.c.bf16 %v435, %v435
      %v441 = vsel %vm314, %v437, 0
      %v444 = vsel %vm318, %v438, 0
      %v447 = vsel %vm318, %v439, 0
      %449 = vmatprep.subr.bf16.mxu0 0
      %450 = vmatpush1.bf16.msra.mxu0 0
      %451 = vmatprep.subr.bf16.mxu0 0
      %452 = vmatpush1.bf16.msra.mxu0 0
      %453 = vmatprep.subr.bf16.mxu0 0
      %454 = vmatpush1.bf16.msra.mxu0 0
      %455 = vmatprep.subr.bf16.mxu0 0
      %456 = vmatpush1.bf16.msra.mxu0 0
      %457 = vmatprep.subr.bf16.mxu0 0
      %458 = vmatpush1.bf16.msra.mxu0 0
      %459 = vmatprep.subr.bf16.mxu0 0
      %460 = vmatpush1.bf16.msra.mxu0 0
      %461 = vmatprep.subr.bf16.mxu0 0
      %462 = vmatpush1.bf16.msra.mxu0 0
      %463 = vmatprep.subr.bf16.mxu0 %v447
      %464 = vmatpush1.bf16.msra.mxu0 %v444
      %465 = vmatprep.subr.bf16.mxu0 0
      %466 = vmatpush2.bf16.msra.mxu0 0
      %467 = vmatprep.subr.bf16.mxu0 0
      %468 = vmatpush2.bf16.msra.mxu0 0
      %469 = vmatprep.subr.bf16.mxu0 0
      %470 = vmatpush2.bf16.msra.mxu0 0
      %471 = vmatprep.subr.bf16.mxu0 0
      %472 = vmatpush2.bf16.msra.mxu0 0
      %473 = vmatprep.subr.bf16.mxu0 0
      %474 = vmatpush2.bf16.msra.mxu0 0
      %475 = vmatprep.subr.bf16.mxu0 0
      %476 = vmatpush2.bf16.msra.mxu0 0
      %477 = vmatprep.subr.bf16.mxu0 0
      %478 = vmatpush2.bf16.msra.mxu0 0
      %479 = vmatprep.subr.bf16.mxu0 0
      %480 = vmatpush2.bf16.msra.mxu0 0
      %481 = vmatprep.mubr.bf16.mxu0 0
      %482 = vmatmul.mubr.bf16.gmra.mxu0 %v441
      %v483 = vpop.f32.mrf.mxu0
      %v484 = vadd.f32 0.0, %v483
      %v485 = vpop.f32.mrf.mxu0
      %v486 = vadd.f32 0.0, %v485
      %v487 = vpop.f32.mrf.mxu0
      %v488 = vpop.f32.mrf.mxu0
      %489 = vdwg.mxu0
      %v490 = vadd.f32 %v410, %v484
      %v491 = vadd.f32 %v412, %v486
      %492 = vrot.lane.b32.xlu0 %v261, 1
      %v493 = vpop.permute.xlu0 %492
      %494 = vrot.lane.b32.xlu0 %v263, 1
      %v495 = vpop.permute.xlu0 %494
      %v496 = vsel %vm291, %v493, %v495
      %v497 = vsel %vm291, %v495, %v493
      %v498 = vmul.f32 %v497, %v298
      %v499 = vmul.f32 %v496, %v302
      %s500 = scalar_lea.vmem %s1, 12
      %v501 = vld [vmem:[%s500] sm:$0xf]
      %v502 = vpack.c.bf16 %v498, %v498
      %v503 = vpack.c.bf16 %v499, %v499
      %v505 = vsel %vm314, %v501, 0
      %v508 = vsel %vm318, %v502, 0
      %v511 = vsel %vm318, %v503, 0
      %513 = vmatprep.subr.bf16.mxu0 0
      %514 = vmatpush1.bf16.msra.mxu0 0
      %515 = vmatprep.subr.bf16.mxu0 0
      %516 = vmatpush1.bf16.msra.mxu0 0
      %517 = vmatprep.subr.bf16.mxu0 0
      %518 = vmatpush1.bf16.msra.mxu0 0
      %519 = vmatprep.subr.bf16.mxu0 0
      %520 = vmatpush1.bf16.msra.mxu0 0
      %521 = vmatprep.subr.bf16.mxu0 0
      %522 = vmatpush1.bf16.msra.mxu0 0
      %523 = vmatprep.subr.bf16.mxu0 0
      %524 = vmatpush1.bf16.msra.mxu0 0
      %525 = vmatprep.subr.bf16.mxu0 0
      %526 = vmatpush1.bf16.msra.mxu0 0
      %527 = vmatprep.subr.bf16.mxu0 %v511
      %528 = vmatpush1.bf16.msra.mxu0 %v508
      %529 = vmatprep.subr.bf16.mxu0 0
      %530 = vmatpush2.bf16.msra.mxu0 0
      %531 = vmatprep.subr.bf16.mxu0 0
      %532 = vmatpush2.bf16.msra.mxu0 0
      %533 = vmatprep.subr.bf16.mxu0 0
      %534 = vmatpush2.bf16.msra.mxu0 0
      %535 = vmatprep.subr.bf16.mxu0 0
      %536 = vmatpush2.bf16.msra.mxu0 0
      %537 = vmatprep.subr.bf16.mxu0 0
      %538 = vmatpush2.bf16.msra.mxu0 0
      %539 = vmatprep.subr.bf16.mxu0 0
      %540 = vmatpush2.bf16.msra.mxu0 0
      %541 = vmatprep.subr.bf16.mxu0 0
      %542 = vmatpush2.bf16.msra.mxu0 0
      %543 = vmatprep.subr.bf16.mxu0 0
      %544 = vmatpush2.bf16.msra.mxu0 0
      %545 = vmatprep.mubr.bf16.mxu0 0
      %546 = vmatmul.mubr.bf16.gmra.mxu0 %v505
      %v547 = vpop.f32.mrf.mxu0
      %v548 = vadd.f32 0.0, %v547
      %v549 = vpop.f32.mrf.mxu0
      %v550 = vadd.f32 0.0, %v549
      %v551 = vpop.f32.mrf.mxu0
      %v552 = vpop.f32.mrf.mxu0
      %553 = vdwg.mxu0
      %v554 = vadd.f32 %v490, %v548
      %v555 = vadd.f32 %v491, %v550
      %s556 = scalar_lea.vmem %s1, 16
      %v557 = vld [vmem:[%s556] sm:$0xf]
      %v558 = vpack.c.bf16 %v261, %v261
      %v559 = vpack.c.bf16 %v263, %v263
      %v561 = vsel %vm314, %v557, 0
      %v564 = vsel %vm318, %v558, 0
      %v567 = vsel %vm318, %v559, 0
      %569 = vmatprep.subr.bf16.mxu0 0
      %570 = vmatpush1.bf16.msra.mxu0 0
      %571 = vmatprep.subr.bf16.mxu0 0
      %572 = vmatpush1.bf16.msra.mxu0 0
      %573 = vmatprep.subr.bf16.mxu0 0
      %574 = vmatpush1.bf16.msra.mxu0 0
      %575 = vmatprep.subr.bf16.mxu0 0
      %576 = vmatpush1.bf16.msra.mxu0 0
      %577 = vmatprep.subr.bf16.mxu0 0
      %578 = vmatpush1.bf16.msra.mxu0 0
      %579 = vmatprep.subr.bf16.mxu0 0
      %580 = vmatpush1.bf16.msra.mxu0 0
      %581 = vmatprep.subr.bf16.mxu0 0
      %582 = vmatpush1.bf16.msra.mxu0 0
      %583 = vmatprep.subr.bf16.mxu0 %v567
      %584 = vmatpush1.bf16.msra.mxu0 %v564
      %585 = vmatprep.subr.bf16.mxu0 0
      %586 = vmatpush2.bf16.msra.mxu0 0
      %587 = vmatprep.subr.bf16.mxu0 0
      %588 = vmatpush2.bf16.msra.mxu0 0
      %589 = vmatprep.subr.bf16.mxu0 0
      %590 = vmatpush2.bf16.msra.mxu0 0
      %591 = vmatprep.subr.bf16.mxu0 0
      %592 = vmatpush2.bf16.msra.mxu0 0
      %593 = vmatprep.subr.bf16.mxu0 0
      %594 = vmatpush2.bf16.msra.mxu0 0
      %595 = vmatprep.subr.bf16.mxu0 0
      %596 = vmatpush2.bf16.msra.mxu0 0
      %597 = vmatprep.subr.bf16.mxu0 0
      %598 = vmatpush2.bf16.msra.mxu0 0
      %599 = vmatprep.subr.bf16.mxu0 0
      %600 = vmatpush2.bf16.msra.mxu0 0
      %601 = vmatprep.mubr.bf16.mxu0 0
      %602 = vmatmul.mubr.bf16.gmra.mxu0 %v561
      %v603 = vpop.f32.mrf.mxu0
      %v604 = vadd.f32 0.0, %v603
      %v605 = vpop.f32.mrf.mxu0
      %v606 = vadd.f32 0.0, %v605
      %v607 = vpop.f32.mrf.mxu0
      %v608 = vpop.f32.mrf.mxu0
      %609 = vdwg.mxu0
      %v610 = vadd.f32 %v554, %v604
      %v611 = vadd.f32 %v555, %v606
      %612 = vrot.lane.b32.xlu0 %v261, 127
      %v613 = vpop.permute.xlu0 %612
      %614 = vrot.lane.b32.xlu0 %v263, 127
      %v615 = vpop.permute.xlu0 %614
      %v616 = vsel %vm420, %v613, %v615
      %v617 = vsel %vm420, %v615, %v613
      %v618 = vmul.f32 %v616, %v427
      %v619 = vmul.f32 %v617, %v431
      %s620 = scalar_lea.vmem %s1, 20
      %v621 = vld [vmem:[%s620] sm:$0xf]
      %v622 = vpack.c.bf16 %v618, %v618
      %v623 = vpack.c.bf16 %v619, %v619
      %v625 = vsel %vm314, %v621, 0
      %v628 = vsel %vm318, %v622, 0
      %v631 = vsel %vm318, %v623, 0
      %633 = vmatprep.subr.bf16.mxu0 0
      %634 = vmatpush1.bf16.msra.mxu0 0
      %635 = vmatprep.subr.bf16.mxu0 0
      %636 = vmatpush1.bf16.msra.mxu0 0
      %637 = vmatprep.subr.bf16.mxu0 0
      %638 = vmatpush1.bf16.msra.mxu0 0
      %639 = vmatprep.subr.bf16.mxu0 0
      %640 = vmatpush1.bf16.msra.mxu0 0
      %641 = vmatprep.subr.bf16.mxu0 0
      %642 = vmatpush1.bf16.msra.mxu0 0
      %643 = vmatprep.subr.bf16.mxu0 0
      %644 = vmatpush1.bf16.msra.mxu0 0
      %645 = vmatprep.subr.bf16.mxu0 0
      %646 = vmatpush1.bf16.msra.mxu0 0
      %647 = vmatprep.subr.bf16.mxu0 %v631
      %648 = vmatpush1.bf16.msra.mxu0 %v628
      %649 = vmatprep.subr.bf16.mxu0 0
      %650 = vmatpush2.bf16.msra.mxu0 0
      %651 = vmatprep.subr.bf16.mxu0 0
      %652 = vmatpush2.bf16.msra.mxu0 0
      %653 = vmatprep.subr.bf16.mxu0 0
      %654 = vmatpush2.bf16.msra.mxu0 0
      %655 = vmatprep.subr.bf16.mxu0 0
      %656 = vmatpush2.bf16.msra.mxu0 0
      %657 = vmatprep.subr.bf16.mxu0 0
      %658 = vmatpush2.bf16.msra.mxu0 0
      %659 = vmatprep.subr.bf16.mxu0 0
      %660 = vmatpush2.bf16.msra.mxu0 0
      %661 = vmatprep.subr.bf16.mxu0 0
      %662 = vmatpush2.bf16.msra.mxu0 0
      %663 = vmatprep.subr.bf16.mxu0 0
      %664 = vmatpush2.bf16.msra.mxu0 0
      %665 = vmatprep.mubr.bf16.mxu0 0
      %666 = vmatmul.mubr.bf16.gmra.mxu0 %v625
      %v667 = vpop.f32.mrf.mxu0
      %v668 = vadd.f32 0.0, %v667
      %v669 = vpop.f32.mrf.mxu0
      %v670 = vadd.f32 0.0, %v669
      %v671 = vpop.f32.mrf.mxu0
      %v672 = vpop.f32.mrf.mxu0
      %673 = vdwg.mxu0
      %v674 = vadd.f32 %v610, %v668
      %v675 = vadd.f32 %v611, %v670
      %676 = vrot.lane.b32.xlu0 %v261, 112
      %v677 = vpop.permute.xlu0 %676
      %678 = vrot.lane.b32.xlu0 %v263, 112
      %v679 = vpop.permute.xlu0 %678
      %vm680 = vcmp.lt.s32.totalorder %v270, 112
      %v681 = vsel %vm680, %v677, %v679
      %v682 = vsel %vm680, %v679, %v677
      %v684 = vlaneseq
      %v685 = vshrl.u32 %v684, 7
      %v686 = vsub.s32 0, %v685
      %v687 = vrot.slane %v255, %v686
      %v688 = vlaneseq
      %v689 = vshrl.u32 %v688, 7
      %v690 = vsub.s32 1, %v689
      %v691 = vrot.slane %v255, %v690
      %v694 = vmul.f32 %v681, %v687
      %v695 = vmul.f32 %v682, %v691
      %696 = vrot.lane.b32.xlu0 %v694, 1
      %v697 = vpop.permute.xlu0 %696
      %698 = vrot.lane.b32.xlu0 %v695, 1
      %v699 = vpop.permute.xlu0 %698
      %v700 = vsel %vm291, %v697, %v699
      %v701 = vsel %vm291, %v699, %v697
      %v702 = vmul.f32 %v701, %v298
      %v703 = vmul.f32 %v700, %v302
      %s704 = scalar_lea.vmem %s1, 24
      %v705 = vld [vmem:[%s704] sm:$0xf]
      %v706 = vpack.c.bf16 %v702, %v702
      %v707 = vpack.c.bf16 %v703, %v703
      %v709 = vsel %vm314, %v705, 0
      %v712 = vsel %vm318, %v706, 0
      %v715 = vsel %vm318, %v707, 0
      %717 = vmatprep.subr.bf16.mxu0 0
      %718 = vmatpush1.bf16.msra.mxu0 0
      %719 = vmatprep.subr.bf16.mxu0 0
      %720 = vmatpush1.bf16.msra.mxu0 0
      %721 = vmatprep.subr.bf16.mxu0 0
      %722 = vmatpush1.bf16.msra.mxu0 0
      %723 = vmatprep.subr.bf16.mxu0 0
      %724 = vmatpush1.bf16.msra.mxu0 0
      %725 = vmatprep.subr.bf16.mxu0 0
      %726 = vmatpush1.bf16.msra.mxu0 0
      %727 = vmatprep.subr.bf16.mxu0 0
      %728 = vmatpush1.bf16.msra.mxu0 0
      %729 = vmatprep.subr.bf16.mxu0 0
      %730 = vmatpush1.bf16.msra.mxu0 0
      %731 = vmatprep.subr.bf16.mxu0 %v715
      %732 = vmatpush1.bf16.msra.mxu0 %v712
      %733 = vmatprep.subr.bf16.mxu0 0
      %734 = vmatpush2.bf16.msra.mxu0 0
      %735 = vmatprep.subr.bf16.mxu0 0
      %736 = vmatpush2.bf16.msra.mxu0 0
      %737 = vmatprep.subr.bf16.mxu0 0
      %738 = vmatpush2.bf16.msra.mxu0 0
      %739 = vmatprep.subr.bf16.mxu0 0
      %740 = vmatpush2.bf16.msra.mxu0 0
      %741 = vmatprep.subr.bf16.mxu0 0
      %742 = vmatpush2.bf16.msra.mxu0 0
      %743 = vmatprep.subr.bf16.mxu0 0
      %744 = vmatpush2.bf16.msra.mxu0 0
      %745 = vmatprep.subr.bf16.mxu0 0
      %746 = vmatpush2.bf16.msra.mxu0 0
      %747 = vmatprep.subr.bf16.mxu0 0
      %748 = vmatpush2.bf16.msra.mxu0 0
      %749 = vmatprep.mubr.bf16.mxu0 0
      %750 = vmatmul.mubr.bf16.gmra.mxu0 %v709
      %v751 = vpop.f32.mrf.mxu0
      %v752 = vadd.f32 0.0, %v751
      %v753 = vpop.f32.mrf.mxu0
      %v754 = vadd.f32 0.0, %v753
      %v755 = vpop.f32.mrf.mxu0
      %v756 = vpop.f32.mrf.mxu0
      %757 = vdwg.mxu0
      %v758 = vadd.f32 %v674, %v752
      %v759 = vadd.f32 %v675, %v754
      %s760 = scalar_lea.vmem %s1, 28
      %v761 = vld [vmem:[%s760] sm:$0xf]
      %v762 = vpack.c.bf16 %v694, %v694
      %v763 = vpack.c.bf16 %v695, %v695
      %v765 = vsel %vm314, %v761, 0
      %v768 = vsel %vm318, %v762, 0
      %v771 = vsel %vm318, %v763, 0
      %773 = vmatprep.subr.bf16.mxu0 0
      %774 = vmatpush1.bf16.msra.mxu0 0
      %775 = vmatprep.subr.bf16.mxu0 0
      %776 = vmatpush1.bf16.msra.mxu0 0
      %777 = vmatprep.subr.bf16.mxu0 0
      %778 = vmatpush1.bf16.msra.mxu0 0
      %779 = vmatprep.subr.bf16.mxu0 0
      %780 = vmatpush1.bf16.msra.mxu0 0
      %781 = vmatprep.subr.bf16.mxu0 0
      %782 = vmatpush1.bf16.msra.mxu0 0
      %783 = vmatprep.subr.bf16.mxu0 0
      %784 = vmatpush1.bf16.msra.mxu0 0
      %785 = vmatprep.subr.bf16.mxu0 0
      %786 = vmatpush1.bf16.msra.mxu0 0
      %787 = vmatprep.subr.bf16.mxu0 %v771
      %788 = vmatpush1.bf16.msra.mxu0 %v768
      %789 = vmatprep.subr.bf16.mxu0 0
      %790 = vmatpush2.bf16.msra.mxu0 0
      %791 = vmatprep.subr.bf16.mxu0 0
      %792 = vmatpush2.bf16.msra.mxu0 0
      %793 = vmatprep.subr.bf16.mxu0 0
      %794 = vmatpush2.bf16.msra.mxu0 0
      %795 = vmatprep.subr.bf16.mxu0 0
      %796 = vmatpush2.bf16.msra.mxu0 0
      %797 = vmatprep.subr.bf16.mxu0 0
      %798 = vmatpush2.bf16.msra.mxu0 0
      %799 = vmatprep.subr.bf16.mxu0 0
      %800 = vmatpush2.bf16.msra.mxu0 0
      %801 = vmatprep.subr.bf16.mxu0 0
      %802 = vmatpush2.bf16.msra.mxu0 0
      %803 = vmatprep.subr.bf16.mxu0 0
      %804 = vmatpush2.bf16.msra.mxu0 0
      %805 = vmatprep.mubr.bf16.mxu0 0
      %806 = vmatmul.mubr.bf16.gmra.mxu0 %v765
      %v807 = vpop.f32.mrf.mxu0
      %v808 = vadd.f32 0.0, %v807
      %v809 = vpop.f32.mrf.mxu0
      %v810 = vadd.f32 0.0, %v809
      %v811 = vpop.f32.mrf.mxu0
      %v812 = vpop.f32.mrf.mxu0
      %813 = vdwg.mxu0
      %v814 = vadd.f32 %v758, %v808
      %v815 = vadd.f32 %v759, %v810
      %816 = vrot.lane.b32.xlu0 %v694, 127
      %v817 = vpop.permute.xlu0 %816
      %818 = vrot.lane.b32.xlu0 %v695, 127
      %v819 = vpop.permute.xlu0 %818
      %v820 = vsel %vm420, %v817, %v819
      %v821 = vsel %vm420, %v819, %v817
      %v822 = vmul.f32 %v820, %v427
      %v823 = vmul.f32 %v821, %v431
      %s824 = scalar_lea.vmem %s1, 32
      %v825 = vld [vmem:[%s824] sm:$0xf]
      %v826 = vpack.c.bf16 %v822, %v822
      %v827 = vpack.c.bf16 %v823, %v823
      %v829 = vsel %vm314, %v825, 0
      %v832 = vsel %vm318, %v826, 0
      %v835 = vsel %vm318, %v827, 0
      %837 = vmatprep.subr.bf16.mxu0 0
      %838 = vmatpush1.bf16.msra.mxu0 0
      %839 = vmatprep.subr.bf16.mxu0 0
      %840 = vmatpush1.bf16.msra.mxu0 0
      %841 = vmatprep.subr.bf16.mxu0 0
      %842 = vmatpush1.bf16.msra.mxu0 0
      %843 = vmatprep.subr.bf16.mxu0 0
      %844 = vmatpush1.bf16.msra.mxu0 0
      %845 = vmatprep.subr.bf16.mxu0 0
      %846 = vmatpush1.bf16.msra.mxu0 0
      %847 = vmatprep.subr.bf16.mxu0 0
      %848 = vmatpush1.bf16.msra.mxu0 0
      %849 = vmatprep.subr.bf16.mxu0 0
      %850 = vmatpush1.bf16.msra.mxu0 0
      %851 = vmatprep.subr.bf16.mxu0 %v835
      %852 = vmatpush1.bf16.msra.mxu0 %v832
      %853 = vmatprep.subr.bf16.mxu0 0
      %854 = vmatpush2.bf16.msra.mxu0 0
      %855 = vmatprep.subr.bf16.mxu0 0
      %856 = vmatpush2.bf16.msra.mxu0 0
      %857 = vmatprep.subr.bf16.mxu0 0
      %858 = vmatpush2.bf16.msra.mxu0 0
      %859 = vmatprep.subr.bf16.mxu0 0
      %860 = vmatpush2.bf16.msra.mxu0 0
      %861 = vmatprep.subr.bf16.mxu0 0
      %862 = vmatpush2.bf16.msra.mxu0 0
      %863 = vmatprep.subr.bf16.mxu0 0
      %864 = vmatpush2.bf16.msra.mxu0 0
      %865 = vmatprep.subr.bf16.mxu0 0
      %866 = vmatpush2.bf16.msra.mxu0 0
      %867 = vmatprep.subr.bf16.mxu0 0
      %868 = vmatpush2.bf16.msra.mxu0 0
      %869 = vmatprep.mubr.bf16.mxu0 0
      %870 = vmatmul.mubr.bf16.gmra.mxu0 %v829
      %v871 = vpop.f32.mrf.mxu0
      %v872 = vadd.f32 0.0, %v871
      %v873 = vpop.f32.mrf.mxu0
      %v874 = vadd.f32 0.0, %v873
      %v875 = vpop.f32.mrf.mxu0
      %v876 = vpop.f32.mrf.mxu0
      %877 = vdwg.mxu0
      %v878 = vadd.f32 %v814, %v872
      %v879 = vadd.f32 %v815, %v874
      %v880 = vld [vmem:[%s2] sm:$0xff]
      %882 = vset.pattern.permute.xlu0 0
      %883 = vperm.xlu0 %882, %v880
      %v884 = vpop.permute.xlu0 %883
      %v886 = vadd.f32 %v878, %v884
      %v887 = vadd.f32 %v879, %v884
      %v888 = vmax.f32 %v886, 0.0
      %v889 = vmax.f32 %v887, 0.0
      %890 = vrot.lane.b32.xlu0 %v888, 16
      %v891 = vpop.permute.xlu0 %890
      %892 = vrot.lane.b32.xlu0 %v889, 16
      %v893 = vpop.permute.xlu0 %892
      %v894 = vsel %vm271, %v891, %v893
      %v895 = vsel %vm271, %v893, %v891
      %v896 = vmul.f32 %v895, %v278
      %v897 = vmul.f32 %v894, %v282
      %898 = vrot.lane.b32.xlu0 %v896, 1
      %v899 = vpop.permute.xlu0 %898
      %900 = vrot.lane.b32.xlu0 %v897, 1
      %v901 = vpop.permute.xlu0 %900
      %v902 = vsel %vm291, %v899, %v901
      %v903 = vsel %vm291, %v901, %v899
      %v904 = vmul.f32 %v903, %v298
      %v905 = vmul.f32 %v902, %v302
      %v906 = vld [vmem:[%s3] sm:$0x3]
      %v907 = vpack.c.bf16 %v904, %v904
      %v908 = vpack.c.bf16 %v905, %v905
      %s909 = scalar_lea.vmem %s3, 2
      %v910 = vld [vmem:[%s909] sm:$0x3]
      %v911 = vpack.c.bf16 %v896, %v896
      %v912 = vpack.c.bf16 %v897, %v897
      %vm913 = vcmask 64512
      %v915 = vsel %vm913, %v910, 0
      %vm917 = vcmask 1043456
      %v919 = vsel %vm917, %v911, 0
      %v922 = vsel %vm917, %v912, 0
      %924 = vmatprep.subr.bf16.mxu0 0
      %925 = vmatpush1.bf16.msra.mxu0 0
      %926 = vmatprep.subr.bf16.mxu0 0
      %927 = vmatpush1.bf16.msra.mxu0 0
      %928 = vmatprep.subr.bf16.mxu0 0
      %929 = vmatpush1.bf16.msra.mxu0 0
      %930 = vmatprep.subr.bf16.mxu0 0
      %931 = vmatpush1.bf16.msra.mxu0 0
      %932 = vmatprep.subr.bf16.mxu0 0
      %933 = vmatpush1.bf16.msra.mxu0 0
      %934 = vmatprep.subr.bf16.mxu0 0
      %935 = vmatpush1.bf16.msra.mxu0 0
      %936 = vmatprep.subr.bf16.mxu0 0
      %937 = vmatpush1.bf16.msra.mxu0 0
      %938 = vmatprep.subr.bf16.mxu0 %v922
      %939 = vmatpush1.bf16.msra.mxu0 %v919
      %940 = vmatprep.subr.bf16.mxu0 0
      %941 = vmatpush2.bf16.msra.mxu0 0
      %942 = vmatprep.subr.bf16.mxu0 0
      %943 = vmatpush2.bf16.msra.mxu0 0
      %944 = vmatprep.subr.bf16.mxu0 0
      %945 = vmatpush2.bf16.msra.mxu0 0
      %946 = vmatprep.subr.bf16.mxu0 0
      %947 = vmatpush2.bf16.msra.mxu0 0
      %948 = vmatprep.subr.bf16.mxu0 0
      %949 = vmatpush2.bf16.msra.mxu0 0
      %950 = vmatprep.subr.bf16.mxu0 0
      %951 = vmatpush2.bf16.msra.mxu0 0
      %952 = vmatprep.subr.bf16.mxu0 0
      %953 = vmatpush2.bf16.msra.mxu0 0
      %954 = vmatprep.subr.bf16.mxu0 0
      %955 = vmatpush2.bf16.msra.mxu0 0
      %956 = vmatprep.mubr.bf16.mxu0 0
      %957 = vmatmul.mubr.bf16.gmra.mxu0 %v915
      %v958 = vpop.f32.mrf.mxu0
      %v959 = vadd.f32 0.0, %v958
      %v960 = vpop.f32.mrf.mxu0
      %v961 = vadd.f32 0.0, %v960
      %v962 = vpop.f32.mrf.mxu0
      %v963 = vpop.f32.mrf.mxu0
      %964 = vdwg.mxu0
      %v966 = vsel %vm913, %v906, 0
      %v969 = vsel %vm917, %v907, 0
      %v972 = vsel %vm917, %v908, 0
      %974 = vmatprep.subr.bf16.mxu0 0
      %975 = vmatpush1.bf16.msra.mxu0 0
      %976 = vmatprep.subr.bf16.mxu0 0
      %977 = vmatpush1.bf16.msra.mxu0 0
      %978 = vmatprep.subr.bf16.mxu0 0
      %979 = vmatpush1.bf16.msra.mxu0 0
      %980 = vmatprep.subr.bf16.mxu0 0
      %981 = vmatpush1.bf16.msra.mxu0 0
      %982 = vmatprep.subr.bf16.mxu0 0
      %983 = vmatpush1.bf16.msra.mxu0 0
      %984 = vmatprep.subr.bf16.mxu0 0
      %985 = vmatpush1.bf16.msra.mxu0 0
      %986 = vmatprep.subr.bf16.mxu0 0
      %987 = vmatpush1.bf16.msra.mxu0 0
      %988 = vmatprep.subr.bf16.mxu0 %v972
      %989 = vmatpush1.bf16.msra.mxu0 %v969
      %990 = vmatprep.subr.bf16.mxu0 0
      %991 = vmatpush2.bf16.msra.mxu0 0
      %992 = vmatprep.subr.bf16.mxu0 0
      %993 = vmatpush2.bf16.msra.mxu0 0
      %994 = vmatprep.subr.bf16.mxu0 0
      %995 = vmatpush2.bf16.msra.mxu0 0
      %996 = vmatprep.subr.bf16.mxu0 0
      %997 = vmatpush2.bf16.msra.mxu0 0
      %998 = vmatprep.subr.bf16.mxu0 0
      %999 = vmatpush2.bf16.msra.mxu0 0
      %1000 = vmatprep.subr.bf16.mxu0 0
      %1001 = vmatpush2.bf16.msra.mxu0 0
      %1002 = vmatprep.subr.bf16.mxu0 0
      %1003 = vmatpush2.bf16.msra.mxu0 0
      %1004 = vmatprep.subr.bf16.mxu0 0
      %1005 = vmatpush2.bf16.msra.mxu0 0
      %1006 = vmatprep.mubr.bf16.mxu0 0
      %1007 = vmatmul.mubr.bf16.gmra.mxu0 %v966
      %v1008 = vpop.f32.mrf.mxu0
      %v1009 = vadd.f32 %v959, %v1008
      %v1010 = vpop.f32.mrf.mxu0
      %v1011 = vadd.f32 %v961, %v1010
      %v1012 = vpop.f32.mrf.mxu0
      %v1013 = vpop.f32.mrf.mxu0
      %1014 = vdwg.mxu0
      %1015 = vrot.lane.b32.xlu0 %v896, 127
      %v1016 = vpop.permute.xlu0 %1015
      %1017 = vrot.lane.b32.xlu0 %v897, 127
      %v1018 = vpop.permute.xlu0 %1017
      %v1019 = vsel %vm420, %v1016, %v1018
      %v1020 = vsel %vm420, %v1018, %v1016
      %v1021 = vmul.f32 %v1019, %v427
      %v1022 = vmul.f32 %v1020, %v431
      %s1023 = scalar_lea.vmem %s3, 4
      %v1024 = vld [vmem:[%s1023] sm:$0x3]
      %v1025 = vpack.c.bf16 %v1021, %v1021
      %v1026 = vpack.c.bf16 %v1022, %v1022
      %v1028 = vsel %vm913, %v1024, 0
      %v1031 = vsel %vm917, %v1025, 0
      %v1034 = vsel %vm917, %v1026, 0
      %1036 = vmatprep.subr.bf16.mxu0 0
      %1037 = vmatpush1.bf16.msra.mxu0 0
      %1038 = vmatprep.subr.bf16.mxu0 0
      %1039 = vmatpush1.bf16.msra.mxu0 0
      %1040 = vmatprep.subr.bf16.mxu0 0
      %1041 = vmatpush1.bf16.msra.mxu0 0
      %1042 = vmatprep.subr.bf16.mxu0 0
      %1043 = vmatpush1.bf16.msra.mxu0 0
      %1044 = vmatprep.subr.bf16.mxu0 0
      %1045 = vmatpush1.bf16.msra.mxu0 0
      %1046 = vmatprep.subr.bf16.mxu0 0
      %1047 = vmatpush1.bf16.msra.mxu0 0
      %1048 = vmatprep.subr.bf16.mxu0 0
      %1049 = vmatpush1.bf16.msra.mxu0 0
      %1050 = vmatprep.subr.bf16.mxu0 %v1034
      %1051 = vmatpush1.bf16.msra.mxu0 %v1031
      %1052 = vmatprep.subr.bf16.mxu0 0
      %1053 = vmatpush2.bf16.msra.mxu0 0
      %1054 = vmatprep.subr.bf16.mxu0 0
      %1055 = vmatpush2.bf16.msra.mxu0 0
      %1056 = vmatprep.subr.bf16.mxu0 0
      %1057 = vmatpush2.bf16.msra.mxu0 0
      %1058 = vmatprep.subr.bf16.mxu0 0
      %1059 = vmatpush2.bf16.msra.mxu0 0
      %1060 = vmatprep.subr.bf16.mxu0 0
      %1061 = vmatpush2.bf16.msra.mxu0 0
      %1062 = vmatprep.subr.bf16.mxu0 0
      %1063 = vmatpush2.bf16.msra.mxu0 0
      %1064 = vmatprep.subr.bf16.mxu0 0
      %1065 = vmatpush2.bf16.msra.mxu0 0
      %1066 = vmatprep.subr.bf16.mxu0 0
      %1067 = vmatpush2.bf16.msra.mxu0 0
      %1068 = vmatprep.mubr.bf16.mxu0 0
      %1069 = vmatmul.mubr.bf16.gmra.mxu0 %v1028
      %v1070 = vpop.f32.mrf.mxu0
      %v1071 = vadd.f32 0.0, %v1070
      %v1072 = vpop.f32.mrf.mxu0
      %v1073 = vadd.f32 0.0, %v1072
      %v1074 = vpop.f32.mrf.mxu0
      %v1075 = vpop.f32.mrf.mxu0
      %1076 = vdwg.mxu0
      %v1077 = vadd.f32 %v1009, %v1071
      %v1078 = vadd.f32 %v1011, %v1073
      %1079 = vrot.lane.b32.xlu0 %v888, 1
      %v1080 = vpop.permute.xlu0 %1079
      %1081 = vrot.lane.b32.xlu0 %v889, 1
      %v1082 = vpop.permute.xlu0 %1081
      %v1083 = vsel %vm291, %v1080, %v1082
      %v1084 = vsel %vm291, %v1082, %v1080
      %v1085 = vmul.f32 %v1084, %v298
      %v1086 = vmul.f32 %v1083, %v302
      %s1087 = scalar_lea.vmem %s3, 6
      %v1088 = vld [vmem:[%s1087] sm:$0x3]
      %v1089 = vpack.c.bf16 %v1085, %v1085
      %v1090 = vpack.c.bf16 %v1086, %v1086
      %v1092 = vsel %vm913, %v1088, 0
      %v1095 = vsel %vm917, %v1089, 0
      %v1098 = vsel %vm917, %v1090, 0
      %1100 = vmatprep.subr.bf16.mxu0 0
      %1101 = vmatpush1.bf16.msra.mxu0 0
      %1102 = vmatprep.subr.bf16.mxu0 0
      %1103 = vmatpush1.bf16.msra.mxu0 0
      %1104 = vmatprep.subr.bf16.mxu0 0
      %1105 = vmatpush1.bf16.msra.mxu0 0
      %1106 = vmatprep.subr.bf16.mxu0 0
      %1107 = vmatpush1.bf16.msra.mxu0 0
      %1108 = vmatprep.subr.bf16.mxu0 0
      %1109 = vmatpush1.bf16.msra.mxu0 0
      %1110 = vmatprep.subr.bf16.mxu0 0
      %1111 = vmatpush1.bf16.msra.mxu0 0
      %1112 = vmatprep.subr.bf16.mxu0 0
      %1113 = vmatpush1.bf16.msra.mxu0 0
      %1114 = vmatprep.subr.bf16.mxu0 %v1098
      %1115 = vmatpush1.bf16.msra.mxu0 %v1095
      %1116 = vmatprep.subr.bf16.mxu0 0
      %1117 = vmatpush2.bf16.msra.mxu0 0
      %1118 = vmatprep.subr.bf16.mxu0 0
      %1119 = vmatpush2.bf16.msra.mxu0 0
      %1120 = vmatprep.subr.bf16.mxu0 0
      %1121 = vmatpush2.bf16.msra.mxu0 0
      %1122 = vmatprep.subr.bf16.mxu0 0
      %1123 = vmatpush2.bf16.msra.mxu0 0
      %1124 = vmatprep.subr.bf16.mxu0 0
      %1125 = vmatpush2.bf16.msra.mxu0 0
      %1126 = vmatprep.subr.bf16.mxu0 0
      %1127 = vmatpush2.bf16.msra.mxu0 0
      %1128 = vmatprep.subr.bf16.mxu0 0
      %1129 = vmatpush2.bf16.msra.mxu0 0
      %1130 = vmatprep.subr.bf16.mxu0 0
      %1131 = vmatpush2.bf16.msra.mxu0 0
      %1132 = vmatprep.mubr.bf16.mxu0 0
      %1133 = vmatmul.mubr.bf16.gmra.mxu0 %v1092
      %v1134 = vpop.f32.mrf.mxu0
      %v1135 = vadd.f32 0.0, %v1134
      %v1136 = vpop.f32.mrf.mxu0
      %v1137 = vadd.f32 0.0, %v1136
      %v1138 = vpop.f32.mrf.mxu0
      %v1139 = vpop.f32.mrf.mxu0
      %1140 = vdwg.mxu0
      %v1141 = vadd.f32 %v1077, %v1135
      %v1142 = vadd.f32 %v1078, %v1137
      %s1143 = scalar_lea.vmem %s3, 8
      %v1144 = vld [vmem:[%s1143] sm:$0x3]
      %v1145 = vpack.c.bf16 %v888, %v888
      %v1146 = vpack.c.bf16 %v889, %v889
      %v1148 = vsel %vm913, %v1144, 0
      %v1151 = vsel %vm917, %v1145, 0
      %v1154 = vsel %vm917, %v1146, 0
      %1156 = vmatprep.subr.bf16.mxu0 0
      %1157 = vmatpush1.bf16.msra.mxu0 0
      %1158 = vmatprep.subr.bf16.mxu0 0
      %1159 = vmatpush1.bf16.msra.mxu0 0
      %1160 = vmatprep.subr.bf16.mxu0 0
      %1161 = vmatpush1.bf16.msra.mxu0 0
      %1162 = vmatprep.subr.bf16.mxu0 0
      %1163 = vmatpush1.bf16.msra.mxu0 0
      %1164 = vmatprep.subr.bf16.mxu0 0
      %1165 = vmatpush1.bf16.msra.mxu0 0
      %1166 = vmatprep.subr.bf16.mxu0 0
      %1167 = vmatpush1.bf16.msra.mxu0 0
      %1168 = vmatprep.subr.bf16.mxu0 0
      %1169 = vmatpush1.bf16.msra.mxu0 0
      %1170 = vmatprep.subr.bf16.mxu0 %v1154
      %1171 = vmatpush1.bf16.msra.mxu0 %v1151
      %1172 = vmatprep.subr.bf16.mxu0 0
      %1173 = vmatpush2.bf16.msra.mxu0 0
      %1174 = vmatprep.subr.bf16.mxu0 0
      %1175 = vmatpush2.bf16.msra.mxu0 0
      %1176 = vmatprep.subr.bf16.mxu0 0
      %1177 = vmatpush2.bf16.msra.mxu0 0
      %1178 = vmatprep.subr.bf16.mxu0 0
      %1179 = vmatpush2.bf16.msra.mxu0 0
      %1180 = vmatprep.subr.bf16.mxu0 0
      %1181 = vmatpush2.bf16.msra.mxu0 0
      %1182 = vmatprep.subr.bf16.mxu0 0
      %1183 = vmatpush2.bf16.msra.mxu0 0
      %1184 = vmatprep.subr.bf16.mxu0 0
      %1185 = vmatpush2.bf16.msra.mxu0 0
      %1186 = vmatprep.subr.bf16.mxu0 0
      %1187 = vmatpush2.bf16.msra.mxu0 0
      %1188 = vmatprep.mubr.bf16.mxu0 0
      %1189 = vmatmul.mubr.bf16.gmra.mxu0 %v1148
      %v1190 = vpop.f32.mrf.mxu0
      %v1191 = vadd.f32 0.0, %v1190
      %v1192 = vpop.f32.mrf.mxu0
      %v1193 = vadd.f32 0.0, %v1192
      %v1194 = vpop.f32.mrf.mxu0
      %v1195 = vpop.f32.mrf.mxu0
      %1196 = vdwg.mxu0
      %v1197 = vadd.f32 %v1141, %v1191
      %v1198 = vadd.f32 %v1142, %v1193
      %1199 = vrot.lane.b32.xlu0 %v888, 127
      %v1200 = vpop.permute.xlu0 %1199
      %1201 = vrot.lane.b32.xlu0 %v889, 127
      %v1202 = vpop.permute.xlu0 %1201
      %v1203 = vsel %vm420, %v1200, %v1202
      %v1204 = vsel %vm420, %v1202, %v1200
      %v1205 = vmul.f32 %v1203, %v427
      %v1206 = vmul.f32 %v1204, %v431
      %s1207 = scalar_lea.vmem %s3, 10
      %v1208 = vld [vmem:[%s1207] sm:$0x3]
      %v1209 = vpack.c.bf16 %v1205, %v1205
      %v1210 = vpack.c.bf16 %v1206, %v1206
      %v1212 = vsel %vm913, %v1208, 0
      %v1215 = vsel %vm917, %v1209, 0
      %v1218 = vsel %vm917, %v1210, 0
      %1220 = vmatprep.subr.bf16.mxu0 0
      %1221 = vmatpush1.bf16.msra.mxu0 0
      %1222 = vmatprep.subr.bf16.mxu0 0
      %1223 = vmatpush1.bf16.msra.mxu0 0
      %1224 = vmatprep.subr.bf16.mxu0 0
      %1225 = vmatpush1.bf16.msra.mxu0 0
      %1226 = vmatprep.subr.bf16.mxu0 0
      %1227 = vmatpush1.bf16.msra.mxu0 0
      %1228 = vmatprep.subr.bf16.mxu0 0
      %1229 = vmatpush1.bf16.msra.mxu0 0
      %1230 = vmatprep.subr.bf16.mxu0 0
      %1231 = vmatpush1.bf16.msra.mxu0 0
      %1232 = vmatprep.subr.bf16.mxu0 0
      %1233 = vmatpush1.bf16.msra.mxu0 0
      %1234 = vmatprep.subr.bf16.mxu0 %v1218
      %1235 = vmatpush1.bf16.msra.mxu0 %v1215
      %1236 = vmatprep.subr.bf16.mxu0 0
      %1237 = vmatpush2.bf16.msra.mxu0 0
      %1238 = vmatprep.subr.bf16.mxu0 0
      %1239 = vmatpush2.bf16.msra.mxu0 0
      %1240 = vmatprep.subr.bf16.mxu0 0
      %1241 = vmatpush2.bf16.msra.mxu0 0
      %1242 = vmatprep.subr.bf16.mxu0 0
      %1243 = vmatpush2.bf16.msra.mxu0 0
      %1244 = vmatprep.subr.bf16.mxu0 0
      %1245 = vmatpush2.bf16.msra.mxu0 0
      %1246 = vmatprep.subr.bf16.mxu0 0
      %1247 = vmatpush2.bf16.msra.mxu0 0
      %1248 = vmatprep.subr.bf16.mxu0 0
      %1249 = vmatpush2.bf16.msra.mxu0 0
      %1250 = vmatprep.subr.bf16.mxu0 0
      %1251 = vmatpush2.bf16.msra.mxu0 0
      %1252 = vmatprep.mubr.bf16.mxu0 0
      %1253 = vmatmul.mubr.bf16.gmra.mxu0 %v1212
      %v1254 = vpop.f32.mrf.mxu0
      %v1255 = vadd.f32 0.0, %v1254
      %v1256 = vpop.f32.mrf.mxu0
      %v1257 = vadd.f32 0.0, %v1256
      %v1258 = vpop.f32.mrf.mxu0
      %v1259 = vpop.f32.mrf.mxu0
      %1260 = vdwg.mxu0
      %v1261 = vadd.f32 %v1197, %v1255
      %v1262 = vadd.f32 %v1198, %v1257
      %1263 = vrot.lane.b32.xlu0 %v888, 112
      %v1264 = vpop.permute.xlu0 %1263
      %1265 = vrot.lane.b32.xlu0 %v889, 112
      %v1266 = vpop.permute.xlu0 %1265
      %v1267 = vsel %vm680, %v1264, %v1266
      %v1268 = vsel %vm680, %v1266, %v1264
      %v1269 = vmul.f32 %v1267, %v687
      %v1270 = vmul.f32 %v1268, %v691
      %1271 = vrot.lane.b32.xlu0 %v1269, 1
      %v1272 = vpop.permute.xlu0 %1271
      %1273 = vrot.lane.b32.xlu0 %v1270, 1
      %v1274 = vpop.permute.xlu0 %1273
      %v1275 = vsel %vm291, %v1272, %v1274
      %v1276 = vsel %vm291, %v1274, %v1272
      %v1277 = vmul.f32 %v1276, %v298
      %v1278 = vmul.f32 %v1275, %v302
      %s1279 = scalar_lea.vmem %s3, 12
      %v1280 = vld [vmem:[%s1279] sm:$0x3]
      %v1281 = vpack.c.bf16 %v1277, %v1277
      %v1282 = vpack.c.bf16 %v1278, %v1278
      %v1284 = vsel %vm913, %v1280, 0
      %v1287 = vsel %vm917, %v1281, 0
      %v1290 = vsel %vm917, %v1282, 0
      %1292 = vmatprep.subr.bf16.mxu0 0
      %1293 = vmatpush1.bf16.msra.mxu0 0
      %1294 = vmatprep.subr.bf16.mxu0 0
      %1295 = vmatpush1.bf16.msra.mxu0 0
      %1296 = vmatprep.subr.bf16.mxu0 0
      %1297 = vmatpush1.bf16.msra.mxu0 0
      %1298 = vmatprep.subr.bf16.mxu0 0
      %1299 = vmatpush1.bf16.msra.mxu0 0
      %1300 = vmatprep.subr.bf16.mxu0 0
      %1301 = vmatpush1.bf16.msra.mxu0 0
      %1302 = vmatprep.subr.bf16.mxu0 0
      %1303 = vmatpush1.bf16.msra.mxu0 0
      %1304 = vmatprep.subr.bf16.mxu0 0
      %1305 = vmatpush1.bf16.msra.mxu0 0
      %1306 = vmatprep.subr.bf16.mxu0 %v1290
      %1307 = vmatpush1.bf16.msra.mxu0 %v1287
      %1308 = vmatprep.subr.bf16.mxu0 0
      %1309 = vmatpush2.bf16.msra.mxu0 0
      %1310 = vmatprep.subr.bf16.mxu0 0
      %1311 = vmatpush2.bf16.msra.mxu0 0
      %1312 = vmatprep.subr.bf16.mxu0 0
      %1313 = vmatpush2.bf16.msra.mxu0 0
      %1314 = vmatprep.subr.bf16.mxu0 0
      %1315 = vmatpush2.bf16.msra.mxu0 0
      %1316 = vmatprep.subr.bf16.mxu0 0
      %1317 = vmatpush2.bf16.msra.mxu0 0
      %1318 = vmatprep.subr.bf16.mxu0 0
      %1319 = vmatpush2.bf16.msra.mxu0 0
      %1320 = vmatprep.subr.bf16.mxu0 0
      %1321 = vmatpush2.bf16.msra.mxu0 0
      %1322 = vmatprep.subr.bf16.mxu0 0
      %1323 = vmatpush2.bf16.msra.mxu0 0
      %1324 = vmatprep.mubr.bf16.mxu0 0
      %1325 = vmatmul.mubr.bf16.gmra.mxu0 %v1284
      %v1326 = vpop.f32.mrf.mxu0
      %v1327 = vadd.f32 0.0, %v1326
      %v1328 = vpop.f32.mrf.mxu0
      %v1329 = vadd.f32 0.0, %v1328
      %v1330 = vpop.f32.mrf.mxu0
      %v1331 = vpop.f32.mrf.mxu0
      %1332 = vdwg.mxu0
      %v1333 = vadd.f32 %v1261, %v1327
      %v1334 = vadd.f32 %v1262, %v1329
      %s1335 = scalar_lea.vmem %s3, 14
      %v1336 = vld [vmem:[%s1335] sm:$0x3]
      %v1337 = vpack.c.bf16 %v1269, %v1269
      %v1338 = vpack.c.bf16 %v1270, %v1270
      %v1340 = vsel %vm913, %v1336, 0
      %v1343 = vsel %vm917, %v1337, 0
      %v1346 = vsel %vm917, %v1338, 0
      %1348 = vmatprep.subr.bf16.mxu0 0
      %1349 = vmatpush1.bf16.msra.mxu0 0
      %1350 = vmatprep.subr.bf16.mxu0 0
      %1351 = vmatpush1.bf16.msra.mxu0 0
      %1352 = vmatprep.subr.bf16.mxu0 0
      %1353 = vmatpush1.bf16.msra.mxu0 0
      %1354 = vmatprep.subr.bf16.mxu0 0
      %1355 = vmatpush1.bf16.msra.mxu0 0
      %1356 = vmatprep.subr.bf16.mxu0 0
      %1357 = vmatpush1.bf16.msra.mxu0 0
      %1358 = vmatprep.subr.bf16.mxu0 0
      %1359 = vmatpush1.bf16.msra.mxu0 0
      %1360 = vmatprep.subr.bf16.mxu0 0
      %1361 = vmatpush1.bf16.msra.mxu0 0
      %1362 = vmatprep.subr.bf16.mxu0 %v1346
      %1363 = vmatpush1.bf16.msra.mxu0 %v1343
      %1364 = vmatprep.subr.bf16.mxu0 0
      %1365 = vmatpush2.bf16.msra.mxu0 0
      %1366 = vmatprep.subr.bf16.mxu0 0
      %1367 = vmatpush2.bf16.msra.mxu0 0
      %1368 = vmatprep.subr.bf16.mxu0 0
      %1369 = vmatpush2.bf16.msra.mxu0 0
      %1370 = vmatprep.subr.bf16.mxu0 0
      %1371 = vmatpush2.bf16.msra.mxu0 0
      %1372 = vmatprep.subr.bf16.mxu0 0
      %1373 = vmatpush2.bf16.msra.mxu0 0
      %1374 = vmatprep.subr.bf16.mxu0 0
      %1375 = vmatpush2.bf16.msra.mxu0 0
      %1376 = vmatprep.subr.bf16.mxu0 0
      %1377 = vmatpush2.bf16.msra.mxu0 0
      %1378 = vmatprep.subr.bf16.mxu0 0
      %1379 = vmatpush2.bf16.msra.mxu0 0
      %1380 = vmatprep.mubr.bf16.mxu0 0
      %1381 = vmatmul.mubr.bf16.gmra.mxu0 %v1340
      %v1382 = vpop.f32.mrf.mxu0
      %v1383 = vadd.f32 0.0, %v1382
      %v1384 = vpop.f32.mrf.mxu0
      %v1385 = vadd.f32 0.0, %v1384
      %v1386 = vpop.f32.mrf.mxu0
      %v1387 = vpop.f32.mrf.mxu0
      %1388 = vdwg.mxu0
      %v1389 = vadd.f32 %v1333, %v1383
      %v1390 = vadd.f32 %v1334, %v1385
      %1391 = vrot.lane.b32.xlu0 %v1269, 127
      %v1392 = vpop.permute.xlu0 %1391
      %1393 = vrot.lane.b32.xlu0 %v1270, 127
      %v1394 = vpop.permute.xlu0 %1393
      %v1395 = vsel %vm420, %v1392, %v1394
      %v1396 = vsel %vm420, %v1394, %v1392
      %v1397 = vmul.f32 %v1395, %v427
      %v1398 = vmul.f32 %v1396, %v431
      %s1399 = scalar_lea.vmem %s3, 16
      %v1400 = vld [vmem:[%s1399] sm:$0x3]
      %v1401 = vpack.c.bf16 %v1397, %v1397
      %v1402 = vpack.c.bf16 %v1398, %v1398
      %v1404 = vsel %vm913, %v1400, 0
      %v1407 = vsel %vm917, %v1401, 0
      %v1410 = vsel %vm917, %v1402, 0
      %1412 = vmatprep.subr.bf16.mxu0 0
      %1413 = vmatpush1.bf16.msra.mxu0 0
      %1414 = vmatprep.subr.bf16.mxu0 0
      %1415 = vmatpush1.bf16.msra.mxu0 0
      %1416 = vmatprep.subr.bf16.mxu0 0
      %1417 = vmatpush1.bf16.msra.mxu0 0
      %1418 = vmatprep.subr.bf16.mxu0 0
      %1419 = vmatpush1.bf16.msra.mxu0 0
      %1420 = vmatprep.subr.bf16.mxu0 0
      %1421 = vmatpush1.bf16.msra.mxu0 0
      %1422 = vmatprep.subr.bf16.mxu0 0
      %1423 = vmatpush1.bf16.msra.mxu0 0
      %1424 = vmatprep.subr.bf16.mxu0 0
      %1425 = vmatpush1.bf16.msra.mxu0 0
      %1426 = vmatprep.subr.bf16.mxu0 %v1410
      %1427 = vmatpush1.bf16.msra.mxu0 %v1407
      %1428 = vmatprep.subr.bf16.mxu0 0
      %1429 = vmatpush2.bf16.msra.mxu0 0
      %1430 = vmatprep.subr.bf16.mxu0 0
      %1431 = vmatpush2.bf16.msra.mxu0 0
      %1432 = vmatprep.subr.bf16.mxu0 0
      %1433 = vmatpush2.bf16.msra.mxu0 0
      %1434 = vmatprep.subr.bf16.mxu0 0
      %1435 = vmatpush2.bf16.msra.mxu0 0
      %1436 = vmatprep.subr.bf16.mxu0 0
      %1437 = vmatpush2.bf16.msra.mxu0 0
      %1438 = vmatprep.subr.bf16.mxu0 0
      %1439 = vmatpush2.bf16.msra.mxu0 0
      %1440 = vmatprep.subr.bf16.mxu0 0
      %1441 = vmatpush2.bf16.msra.mxu0 0
      %1442 = vmatprep.subr.bf16.mxu0 0
      %1443 = vmatpush2.bf16.msra.mxu0 0
      %1444 = vmatprep.mubr.bf16.mxu0 0
      %1445 = vmatmul.mubr.bf16.gmra.mxu0 %v1404
      %v1446 = vpop.f32.mrf.mxu0
      %v1447 = vadd.f32 0.0, %v1446
      %v1448 = vpop.f32.mrf.mxu0
      %v1449 = vadd.f32 0.0, %v1448
      %v1450 = vpop.f32.mrf.mxu0
      %v1451 = vpop.f32.mrf.mxu0
      %1452 = vdwg.mxu0
      %v1453 = vadd.f32 %v1389, %v1447
      %v1454 = vadd.f32 %v1390, %v1449
      %v1455 = vld [vmem:[%s4] sm:$0xf]
      %1457 = vset.pattern.permute.xlu0 0
      %1458 = vperm.xlu0 %1457, %v1455
      %v1459 = vpop.permute.xlu0 %1458
      %v1461 = vadd.f32 %v1453, %v1459
      %v1462 = vadd.f32 %v1454, %v1459
      %v1465 = vcombine.low %v1461, %v1462
      %v1467 = vadd.f32 %v260, %v1465
      %1468 = vst [vmem:[%s251] sm:$0xff] %v1467
      %p1469 = scmp.lt.s32.totalorder %s17, 1
      %s1470 = scalar_select %p1469, %s17, 1
      %s1471 = smul.addr %s1470, 2
      %s1472 = smul.addr %s1471, 4
      %s1473 = scalar_lea.vmem %s6, %s1472
      // Predicated region
      $region45: #{shake_shake_block_forward.1} parent=43 // pred_check
        %p1474 = pneg %p166
      $region46: #{shake_shake_block_forward.1} parent=43 // pred_check_branch
        %1476 = sbr.rel (%p1474) target = $region48
      $region47: #{shake_shake_block_forward.1} parent=43 // pred_region
        _
      $region48: #{shake_shake_block_forward.1} parent=43 // pred_fallthru
        _
    $region44: #{shake_shake_block_forward.1} parent=5 // pred_fallthru
      _
    %p1477 = scmp.le.s32.totalorder 2, %s12
    // Predicated region
    $region49: #{shake_shake_block_forward.1} parent=5 // pred_check
      %p1478 = pneg %p1477
    $region50: #{shake_shake_block_forward.1} parent=5 // pred_check_branch
      %1480 = sbr.rel (%p1478) target = $region52
    $region51: #{shake_shake_block_forward.1} parent=5 // pred_region
      %s1481 = ssub.s32 %s12, 2
      // Predicated region
      $region53: #{shake_shake_block_forward.1} parent=51 // pred_check
        %p1482 = pneg %p172
      $region54: #{shake_shake_block_forward.1} parent=51 // pred_check_branch
        %1484 = sbr.rel (%p1482) target = $region56
      $region55: #{shake_shake_block_forward.1} parent=51 // pred_region
        %p1485 = scmp.lt.s32.totalorder %s18, 1
        %s1486 = scalar_select %p1485, %s18, 1
        %s1487 = smul.addr %s1486, 2
        %s1488 = smul.addr %s1487, 4
        %s1489 = scalar_lea.vmem %s6, %s1488
      $region56: #{shake_shake_block_forward.1} parent=51 // pred_fallthru
        _
    $region52: #{shake_shake_block_forward.1} parent=5 // pred_fallthru
      _
  $region6: #{shake_shake_block_forward.1} parent=0 // loop_footer
    %s16 = sadd.s32 1, %s12
  $region7: #{shake_shake_block_forward.1} parent=0 // loop_footer_branch
    %11 = sbr.rel target = $region3
  $region8: #{shake_shake_block_forward.1} parent=0 // loop_exit
    _

</llo_original>
